<compile_context>
chip_gen: v6e
topology: v6e:2x2x1
jax: 0.10.0
libtpu: 0.0.40
codegen_flags: <defaults>
</compile_context>

<pallas_src>
import jax
import jax.numpy as jnp
from jax.experimental import pallas as pl
from jax.experimental.pallas import tpu as pltpu

# ---------------- "config" (deterministic, in-script) ----------------
KERNEL_SIZES = (1, 2, 3)        # config.prd_txt_encoder.encoder.kernel_size
CNN_NUM = len(KERNEL_SIZES)
EMBED_DIM = 32                  # embedding.embed_dim (shared q/d)
HIDDEN_DIM = 32                 # encoder.hidden_dimension
KERNEL_NUM = 11                 # config.gausian_kernel.kernel_num
SIGMA = 0.1                     # config.gausian_kernel.sigma
EXACT_SIGMA = 0.001             # config.gausian_kernel.exact_sigma
USE_CROSSMATCH = True           # config.cross_match.use_crossmatch
Q_VOCAB = 53
D_VOCAB = 67
PAD_IDX = 0

KMAX = max(KERNEL_SIZES)        # shared right-pad for every conv size
TAPS = KMAX + 1                 # widest Conv1d kernel (reference kernel_size = i + 1)
KIN = TAPS * EMBED_DIM          # im2col feature width = 128 (fills a lane group)


def gaussian_params(kernel_num, sigma, exact_sigma):
    mus, sigmas = [], []
    for i in range(kernel_num):
        mu = 1.0 / (kernel_num - 1) + 2.0 * i / (kernel_num - 1) - 1.0
        s = sigma
        if mu > 1.0:
            s = exact_sigma
            mu = 1.0
        mus.append(mu)
        sigmas.append(s)
    return tuple(mus), tuple(sigmas)


MUS, SIGMAS = gaussian_params(KERNEL_NUM, SIGMA, EXACT_SIGMA)
COEFS = tuple(-0.5 / (s * s) for s in SIGMAS)     # GaussianKernel: exp(coef * (x - mu)^2)


def _round_up(n, m):
    return ((n + m - 1) // m) * m


# ---------------- the single fused Pallas kernel ----------------
def _make_kernel(B, Lq_p, Ld_p):
    MQ, MD = B * Lq_p, B * Ld_p          # rows of q / d conv outputs (8-aligned)
    M = MQ + MD                          # all conv rows (q then d)
    RQ, RD = CNN_NUM * MQ, CNN_NUM * MD  # rows/cols of the block cosine matrix

    def kernel(x_ref, w_ref, b_ref, sd_ref, wf_ref, o_ref):
        # ---- stage 1: Conv1d(+right pad)+Tanh for q & d, all batches, per conv size.
        #      im2col -> each conv size is ONE (M, 128) x (128, 32) matmul (K = 128).
        x = x_ref[...]                                        # (M, 128)
        qn_blocks, dn_blocks = [], []
        for c in range(CNN_NUM):                              # 3 static iterations
            conv = jnp.tanh(
                jnp.dot(x, w_ref[c], preferred_element_type=jnp.float32) + b_ref[c])
            # F.normalize(p=2, dim=-1, eps=1e-12), once per conv output (rsqrt -> EUP).
            nrm = conv * jax.lax.rsqrt(
                jnp.maximum(jnp.sum(conv * conv, axis=-1, keepdims=True), 1e-24))
            qn_blocks.append(nrm[:MQ, :])                     # 8-aligned row slices
            dn_blocks.append(nrm[MQ:, :])
        qn = jnp.concatenate(qn_blocks, axis=0)               # (RQ, H)
        dn = jnp.concatenate(dn_blocks, axis=0)               # (RD, H)

        # ---- stage 2: all 9 cross-match cosine blocks for ALL batches in ONE matmul.
        mm = jax.lax.dot_general(qn, dn, (((1,), (1,)), ((), ())),
                                 preferred_element_type=jnp.float32)   # (RQ, RD)

        # ---- stage 3: 11 Gaussian kernels stacked along rows -> ONE pooling matmul.
        #      sd is the (doc-batch, conv-size) indicator (also masks doc padding).
        g = jnp.concatenate(
            [jnp.exp(COEFS[k] * (mm - MUS[k]) ** 2) for k in range(KERNEL_NUM)],
            axis=0)                                           # (11*RQ, RD)
        pooled = jnp.dot(g, sd_ref[...],
                         preferred_element_type=jnp.float32)  # (11*RQ, B*CNN_NUM)

        # ---- stage 4: log1p + folded output-Linear weights (wf also masks query
        #      padding and cross-batch blocks), then one reduction over all rows.
        wv = jnp.log1p(pooled) * wf_ref[...]                  # (11*RQ, B*CNN_NUM)
        o_ref[...] = jnp.sum(wv, axis=0, keepdims=True)       # (1, B*CNN_NUM)

    return kernel, M, RQ, RD


def _fused_conv_knrm(x, w_cat, b_cat, sd, wf, *, B, Lq_p, Ld_p):
    kernel, M, RQ, RD = _make_kernel(B, Lq_p, Ld_p)
    return pl.pallas_call(
        kernel,
        out_shape=jax.ShapeDtypeStruct((1, B * CNN_NUM), jnp.float32),
        grid=(1,),
        in_specs=[
            pl.BlockSpec((M, KIN), lambda i: (0, 0)),
            pl.BlockSpec((CNN_NUM, KIN, HIDDEN_DIM), lambda i: (0, 0, 0)),
            pl.BlockSpec((CNN_NUM, 1, HIDDEN_DIM), lambda i: (0, 0, 0)),
            pl.BlockSpec((RD, B * CNN_NUM), lambda i: (0, 0)),
            pl.BlockSpec((KERNEL_NUM * RQ, B * CNN_NUM), lambda i: (0, 0)),
        ],
        out_specs=pl.BlockSpec((1, B * CNN_NUM), lambda i: (0, 0)),
        compiler_params=pltpu.CompilerParams(dimension_semantics=("arbitrary",)),
    )(x, w_cat, b_cat, sd, wf)


# ---------------- parameters (deterministic, synthetic) ----------------
def init_params(key):
    ks = jax.random.split(key, 4 + 2 * CNN_NUM)
    q_emb = 0.1 * jax.random.normal(ks[0], (Q_VOCAB, EMBED_DIM), jnp.float32)
    q_emb = q_emb.at[PAD_IDX].set(0.0)
    d_emb = 0.1 * jax.random.normal(ks[1], (D_VOCAB, EMBED_DIM), jnp.float32)
    d_emb = d_emb.at[PAD_IDX].set(0.0)

    # im2col-packed conv weights: (CNN_NUM, TAPS*E, H); zero rows for the unused taps
    # of the smaller kernels make the shared KMAX right-pad exact.
    # NOTE: q_convs[i] and d_convs[i] are the SAME nn.Module in the reference -> shared.
    w_cat = jnp.zeros((CNN_NUM, KIN, HIDDEN_DIM), jnp.float32)
    b_cat = jnp.zeros((CNN_NUM, 1, HIDDEN_DIM), jnp.float32)
    for c, ksz in enumerate(KERNEL_SIZES):
        taps = ksz + 1
        bound = 1.0 / float(jnp.sqrt(EMBED_DIM * taps))
        w = jax.random.uniform(ks[2 + 2 * c], (taps, EMBED_DIM, HIDDEN_DIM),
                               jnp.float32, -bound, bound)
        b = jax.random.uniform(ks[3 + 2 * c], (HIDDEN_DIM,), jnp.float32, -bound, bound)
        w_cat = w_cat.at[c, :taps * EMBED_DIM, :].set(
            w.reshape(taps * EMBED_DIM, HIDDEN_DIM))
        b_cat = b_cat.at[c, 0, :].set(b)

    dim = (CNN_NUM * CNN_NUM if USE_CROSSMATCH else CNN_NUM) * KERNEL_NUM
    lb = 1.0 / float(jnp.sqrt(dim))
    out_w = jax.random.uniform(ks[-2], (1, dim), jnp.float32, -lb, lb)
    out_b = jax.random.uniform(ks[-1], (1,), jnp.float32, -lb, lb)

    # output-Linear weights rearranged to (k, qi, di) -- matches torch.stack(KM, 1) order.
    if USE_CROSSMATCH:
        w3 = jnp.transpose(out_w.reshape(CNN_NUM, CNN_NUM, KERNEL_NUM), (2, 0, 1))
    else:
        w3 = jnp.zeros((KERNEL_NUM, CNN_NUM, CNN_NUM), jnp.float32)
        wd = out_w.reshape(CNN_NUM, KERNEL_NUM)
        for c in range(CNN_NUM):
            w3 = w3.at[:, c, c].set(wd[c])

    return dict(q_emb=q_emb, d_emb=d_emb, w_cat=w_cat, b_cat=b_cat,
                w3=w3, out_w=out_w, out_b=out_b)


# ---------------- host-side (jit) fusion prep ----------------
def _im2col(x, l_pad):
    """(B, L, E) -> (B*l_pad, TAPS*E); right zero-extension covers conv + row padding."""
    b, l, e = x.shape
    xp = jnp.pad(x, ((0, 0), (0, l_pad - l + KMAX), (0, 0)))
    cols = [xp[:, j:j + l_pad, :] for j in range(TAPS)]
    return jnp.concatenate(cols, axis=-1).reshape(b * l_pad, TAPS * e)


def _doc_pool_indicator(B, Ld, Ld_p):
    """(CNN_NUM*B*Ld_p, B*CNN_NUM) doc-sum indicator; zero on padded doc rows."""
    md = B * Ld_p
    r = jnp.arange(CNN_NUM * md)
    j = jnp.arange(B * CNN_NUM)
    ok = ((r[:, None] // md == (j % CNN_NUM)[None, :]) &
          ((r[:, None] % md) // Ld_p == (j // CNN_NUM)[None, :]) &
          ((r[:, None] % Ld_p) < Ld))
    return ok.astype(jnp.float32)


def _folded_weights(w3, B, Lq, Lq_p):
    """(KERNEL_NUM*CNN_NUM*B*Lq_p, B*CNN_NUM) folded Linear weights.

    Entry[(k, qi, bq, t), (bd, di)] = w3[k, qi, di] if bq == bd and t < Lq else 0,
    so it simultaneously applies the output Linear, masks query padding rows and
    zeroes the cross-batch blocks of the big cosine block matrix.
    """
    mq = B * Lq_p
    rq = CNN_NUM * mq
    r = jnp.arange(KERNEL_NUM * rq)
    k_r = r // rq
    qi_r = (r % rq) // mq
    bq_r = (r % mq) // Lq_p
    t_r = r % Lq_p
    j = jnp.arange(B * CNN_NUM)
    w = w3[k_r[:, None], qi_r[:, None], (j % CNN_NUM)[None, :]]
    mask = (bq_r[:, None] == (j // CNN_NUM)[None, :]) & (t_r[:, None] < Lq)
    return jnp.where(mask, w, 0.0).astype(jnp.float32)


# ---------------- full forward ----------------
@jax.jit
def conv_knrm_forward(params, query_ids, doc_ids):
    B, Lq = query_ids.shape
    _, Ld = doc_ids.shape
    # Embedding lookup (glue); dropout is identity at inference time.
    q_embed = jnp.take(params["q_emb"], query_ids, axis=0)       # (B, Lq, E)
    d_embed = jnp.take(params["d_emb"], doc_ids, axis=0)         # (B, Ld, E)

    # Sublane-aligned per-sequence row blocks (multiples of 8).
    Lq_p, Ld_p = _round_up(Lq, 8), _round_up(Ld, 8)

    # im2col (K = TAPS*E = 128) + flatten batch/q/d into one matmul-M dimension.
    x = jnp.concatenate([_im2col(q_embed, Lq_p), _im2col(d_embed, Ld_p)], axis=0)

    sd = _doc_pool_indicator(B, Ld, Ld_p)
    wf = _folded_weights(params["w3"], B, Lq, Lq_p)

    part = _fused_conv_knrm(x, params["w_cat"], params["b_cat"], sd, wf,
                            B=B, Lq_p=Lq_p, Ld_p=Ld_p)           # (1, B*CNN_NUM)
    # Tail glue: sum the 3 per-(batch, doc-conv-size) partials and add the Linear bias.
    scores = jnp.sum(part.reshape(B, CNN_NUM), axis=1, keepdims=True)
    return scores + params["out_b"][None, :]                     # (B, 1)


if __name__ == "__main__":
    B, Lq, Ld = 2, 8, 16
    key = jax.random.PRNGKey(0)
    pkey, qkey, dkey = jax.random.split(key, 3)

    params = init_params(pkey)
    query = jax.random.randint(qkey, (B, Lq), 1, Q_VOCAB, dtype=jnp.int32)  # text_left
    doc = jax.random.randint(dkey, (B, Ld), 1, D_VOCAB, dtype=jnp.int32)    # text_right

    out = conv_knrm_forward(params, query, doc)
    out = jax.block_until_ready(out)
    assert out.shape == (B, 1), out.shape
    assert bool(jnp.all(jnp.isfinite(out)))
    print("KERNEL_OK")
</pallas_src>

<mosaic_0001>
module attributes {stable_mosaic.version = 11 : i64} {
  func.func @kernel(%arg0: i32, %arg1: memref<48x128xf32, #tpu.memory_space<vmem>>, %arg2: memref<3x128x32xf32, #tpu.memory_space<vmem>>, %arg3: memref<3x1x32xf32, #tpu.memory_space<vmem>>, %arg4: memref<96x6xf32, #tpu.memory_space<vmem>>, %arg5: memref<528x6xf32, #tpu.memory_space<vmem>>, %arg6: memref<1x6xf32, #tpu.memory_space<vmem>>) attributes {dimension_semantics = [#tpu.dimension_semantics<arbitrary>], iteration_bounds = array<i64: 1>, scalar_prefetch = 0 : i64, scratch_operands = 0 : i64, tpu.core_type = #tpu.core_type<tc>, window_params = [{pipeline_mode = #tpu.pipeline_mode<synchronous>, transform_indices = @transform_0, window_bounds = array<i64: 48, 128>}, {pipeline_mode = #tpu.pipeline_mode<synchronous>, transform_indices = @transform_1, window_bounds = array<i64: 3, 128, 32>}, {pipeline_mode = #tpu.pipeline_mode<synchronous>, transform_indices = @transform_2, window_bounds = array<i64: 3, 1, 32>}, {pipeline_mode = #tpu.pipeline_mode<synchronous>, transform_indices = @transform_3, window_bounds = array<i64: 96, 6>}, {pipeline_mode = #tpu.pipeline_mode<synchronous>, transform_indices = @transform_4, window_bounds = array<i64: 528, 6>}, {pipeline_mode = #tpu.pipeline_mode<synchronous>, transform_indices = @transform_5, window_bounds = array<i64: 1, 6>}]} {
    %c0 = arith.constant 0 : index
    %c0_0 = arith.constant 0 : index
    %0 = vector.load %arg1[%c0, %c0_0] : memref<48x128xf32, #tpu.memory_space<vmem>>, vector<48x128xf32>
    %c0_1 = arith.constant 0 : index
    %c0_2 = arith.constant 0 : index
    %c0_3 = arith.constant 0 : index
    %1 = vector.load %arg2[%c0_1, %c0_2, %c0_3] : memref<3x128x32xf32, #tpu.memory_space<vmem>>, vector<1x128x32xf32>
    %2 = vector.shape_cast %1 : vector<1x128x32xf32> to vector<128x32xf32>
    %cst = arith.constant dense<0.000000e+00> : vector<48x32xf32>
    %3 = tpu.matmul %0, %2, %cst {dimension_numbers = #tpu.dot_dimension_numbers<[1], [0], [0], [1], [0, 0, 1, 1], [], []>} : vector<48x128xf32>, vector<128x32xf32>, vector<48x32xf32> -> vector<48x32xf32>
    %c0_4 = arith.constant 0 : index
    %c0_5 = arith.constant 0 : index
    %c0_6 = arith.constant 0 : index
    %4 = vector.load %arg3[%c0_4, %c0_5, %c0_6] : memref<3x1x32xf32, #tpu.memory_space<vmem>>, vector<1x1x32xf32>
    %5 = vector.shape_cast %4 : vector<1x1x32xf32> to vector<1x32xf32>
    %6 = vector.broadcast %5 : vector<1x32xf32> to vector<48x32xf32>
    %7 = arith.addf %3, %6 : vector<48x32xf32>
    %8 = math.tanh %7 : vector<48x32xf32>
    %9 = arith.mulf %8, %8 : vector<48x32xf32>
    %cst_7 = arith.constant dense<0.000000e+00> : vector<48xf32>
    %10 = vector.multi_reduction <add>, %9, %cst_7 [1] : vector<48x32xf32> to vector<48xf32>
    %11 = vector.shape_cast %10 : vector<48xf32> to vector<48x1xf32>
    %cst_8 = arith.constant 1.000000e-24 : f32
    %12 = vector.broadcast %cst_8 : f32 to vector<48x1xf32>
    %13 = arith.maximumf %11, %12 : vector<48x1xf32>
    %14 = math.rsqrt %13 : vector<48x1xf32>
    %15 = vector.broadcast %14 : vector<48x1xf32> to vector<48x32xf32>
    %16 = arith.mulf %8, %15 : vector<48x32xf32>
    %17 = vector.extract_strided_slice %16 {offsets = [0, 0], sizes = [16, 32], strides = [1, 1]} : vector<48x32xf32> to vector<16x32xf32>
    %18 = vector.extract_strided_slice %16 {offsets = [16, 0], sizes = [32, 32], strides = [1, 1]} : vector<48x32xf32> to vector<32x32xf32>
    %c1 = arith.constant 1 : index
    %c0_9 = arith.constant 0 : index
    %c0_10 = arith.constant 0 : index
    %19 = vector.load %arg2[%c1, %c0_9, %c0_10] : memref<3x128x32xf32, #tpu.memory_space<vmem>>, vector<1x128x32xf32>
    %20 = vector.shape_cast %19 : vector<1x128x32xf32> to vector<128x32xf32>
    %cst_11 = arith.constant dense<0.000000e+00> : vector<48x32xf32>
    %21 = tpu.matmul %0, %20, %cst_11 {dimension_numbers = #tpu.dot_dimension_numbers<[1], [0], [0], [1], [0, 0, 1, 1], [], []>} : vector<48x128xf32>, vector<128x32xf32>, vector<48x32xf32> -> vector<48x32xf32>
    %c1_12 = arith.constant 1 : index
    %c0_13 = arith.constant 0 : index
    %c0_14 = arith.constant 0 : index
    %22 = vector.load %arg3[%c1_12, %c0_13, %c0_14] : memref<3x1x32xf32, #tpu.memory_space<vmem>>, vector<1x1x32xf32>
    %23 = vector.shape_cast %22 : vector<1x1x32xf32> to vector<1x32xf32>
    %24 = vector.broadcast %23 : vector<1x32xf32> to vector<48x32xf32>
    %25 = arith.addf %21, %24 : vector<48x32xf32>
    %26 = math.tanh %25 : vector<48x32xf32>
    %27 = arith.mulf %26, %26 : vector<48x32xf32>
    %cst_15 = arith.constant dense<0.000000e+00> : vector<48xf32>
    %28 = vector.multi_reduction <add>, %27, %cst_15 [1] : vector<48x32xf32> to vector<48xf32>
    %29 = vector.shape_cast %28 : vector<48xf32> to vector<48x1xf32>
    %cst_16 = arith.constant 1.000000e-24 : f32
    %30 = vector.broadcast %cst_16 : f32 to vector<48x1xf32>
    %31 = arith.maximumf %29, %30 : vector<48x1xf32>
    %32 = math.rsqrt %31 : vector<48x1xf32>
    %33 = vector.broadcast %32 : vector<48x1xf32> to vector<48x32xf32>
    %34 = arith.mulf %26, %33 : vector<48x32xf32>
    %35 = vector.extract_strided_slice %34 {offsets = [0, 0], sizes = [16, 32], strides = [1, 1]} : vector<48x32xf32> to vector<16x32xf32>
    %36 = vector.extract_strided_slice %34 {offsets = [16, 0], sizes = [32, 32], strides = [1, 1]} : vector<48x32xf32> to vector<32x32xf32>
    %c2 = arith.constant 2 : index
    %c0_17 = arith.constant 0 : index
    %c0_18 = arith.constant 0 : index
    %37 = vector.load %arg2[%c2, %c0_17, %c0_18] : memref<3x128x32xf32, #tpu.memory_space<vmem>>, vector<1x128x32xf32>
    %38 = vector.shape_cast %37 : vector<1x128x32xf32> to vector<128x32xf32>
    %cst_19 = arith.constant dense<0.000000e+00> : vector<48x32xf32>
    %39 = tpu.matmul %0, %38, %cst_19 {dimension_numbers = #tpu.dot_dimension_numbers<[1], [0], [0], [1], [0, 0, 1, 1], [], []>} : vector<48x128xf32>, vector<128x32xf32>, vector<48x32xf32> -> vector<48x32xf32>
    %c2_20 = arith.constant 2 : index
    %c0_21 = arith.constant 0 : index
    %c0_22 = arith.constant 0 : index
    %40 = vector.load %arg3[%c2_20, %c0_21, %c0_22] : memref<3x1x32xf32, #tpu.memory_space<vmem>>, vector<1x1x32xf32>
    %41 = vector.shape_cast %40 : vector<1x1x32xf32> to vector<1x32xf32>
    %42 = vector.broadcast %41 : vector<1x32xf32> to vector<48x32xf32>
    %43 = arith.addf %39, %42 : vector<48x32xf32>
    %44 = math.tanh %43 : vector<48x32xf32>
    %45 = arith.mulf %44, %44 : vector<48x32xf32>
    %cst_23 = arith.constant dense<0.000000e+00> : vector<48xf32>
    %46 = vector.multi_reduction <add>, %45, %cst_23 [1] : vector<48x32xf32> to vector<48xf32>
    %47 = vector.shape_cast %46 : vector<48xf32> to vector<48x1xf32>
    %cst_24 = arith.constant 1.000000e-24 : f32
    %48 = vector.broadcast %cst_24 : f32 to vector<48x1xf32>
    %49 = arith.maximumf %47, %48 : vector<48x1xf32>
    %50 = math.rsqrt %49 : vector<48x1xf32>
    %51 = vector.broadcast %50 : vector<48x1xf32> to vector<48x32xf32>
    %52 = arith.mulf %44, %51 : vector<48x32xf32>
    %53 = vector.extract_strided_slice %52 {offsets = [0, 0], sizes = [16, 32], strides = [1, 1]} : vector<48x32xf32> to vector<16x32xf32>
    %54 = vector.extract_strided_slice %52 {offsets = [16, 0], sizes = [32, 32], strides = [1, 1]} : vector<48x32xf32> to vector<32x32xf32>
    %55 = tpu.concatenate %17, %35, %53 in 0 : vector<16x32xf32>, vector<16x32xf32>, vector<16x32xf32> -> vector<48x32xf32>
    %56 = tpu.concatenate %18, %36, %54 in 0 : vector<32x32xf32>, vector<32x32xf32>, vector<32x32xf32> -> vector<96x32xf32>
    %cst_25 = arith.constant dense<0.000000e+00> : vector<48x96xf32>
    %57 = tpu.matmul %55, %56, %cst_25 {dimension_numbers = #tpu.dot_dimension_numbers<[1], [1], [0], [0], [0, 0, 1, 0], [], []>} : vector<48x32xf32>, vector<96x32xf32>, vector<48x96xf32> -> vector<48x96xf32>
    %cst_26 = arith.constant -0.899999976 : f32
    %58 = vector.broadcast %cst_26 : f32 to vector<48x96xf32>
    %59 = arith.subf %57, %58 : vector<48x96xf32>
    %60 = arith.mulf %59, %59 : vector<48x96xf32>
    %cst_27 = arith.constant -5.000000e+01 : f32
    %61 = vector.broadcast %cst_27 : f32 to vector<48x96xf32>
    %62 = arith.mulf %61, %60 : vector<48x96xf32>
    %63 = math.exp %62 : vector<48x96xf32>
    %cst_28 = arith.constant -0.699999988 : f32
    %64 = vector.broadcast %cst_28 : f32 to vector<48x96xf32>
    %65 = arith.subf %57, %64 : vector<48x96xf32>
    %66 = arith.mulf %65, %65 : vector<48x96xf32>
    %cst_29 = arith.constant -5.000000e+01 : f32
    %67 = vector.broadcast %cst_29 : f32 to vector<48x96xf32>
    %68 = arith.mulf %67, %66 : vector<48x96xf32>
    %69 = math.exp %68 : vector<48x96xf32>
    %cst_30 = arith.constant -5.000000e-01 : f32
    %70 = vector.broadcast %cst_30 : f32 to vector<48x96xf32>
    %71 = arith.subf %57, %70 : vector<48x96xf32>
    %72 = arith.mulf %71, %71 : vector<48x96xf32>
    %cst_31 = arith.constant -5.000000e+01 : f32
    %73 = vector.broadcast %cst_31 : f32 to vector<48x96xf32>
    %74 = arith.mulf %73, %72 : vector<48x96xf32>
    %75 = math.exp %74 : vector<48x96xf32>
    %cst_32 = arith.constant -3.000000e-01 : f32
    %76 = vector.broadcast %cst_32 : f32 to vector<48x96xf32>
    %77 = arith.subf %57, %76 : vector<48x96xf32>
    %78 = arith.mulf %77, %77 : vector<48x96xf32>
    %cst_33 = arith.constant -5.000000e+01 : f32
    %79 = vector.broadcast %cst_33 : f32 to vector<48x96xf32>
    %80 = arith.mulf %79, %78 : vector<48x96xf32>
    %81 = math.exp %80 : vector<48x96xf32>
    %cst_34 = arith.constant -1.000000e-01 : f32
    %82 = vector.broadcast %cst_34 : f32 to vector<48x96xf32>
    %83 = arith.subf %57, %82 : vector<48x96xf32>
    %84 = arith.mulf %83, %83 : vector<48x96xf32>
    %cst_35 = arith.constant -5.000000e+01 : f32
    %85 = vector.broadcast %cst_35 : f32 to vector<48x96xf32>
    %86 = arith.mulf %85, %84 : vector<48x96xf32>
    %87 = math.exp %86 : vector<48x96xf32>
    %cst_36 = arith.constant 1.000000e-01 : f32
    %88 = vector.broadcast %cst_36 : f32 to vector<48x96xf32>
    %89 = arith.subf %57, %88 : vector<48x96xf32>
    %90 = arith.mulf %89, %89 : vector<48x96xf32>
    %cst_37 = arith.constant -5.000000e+01 : f32
    %91 = vector.broadcast %cst_37 : f32 to vector<48x96xf32>
    %92 = arith.mulf %91, %90 : vector<48x96xf32>
    %93 = math.exp %92 : vector<48x96xf32>
    %cst_38 = arith.constant 3.000000e-01 : f32
    %94 = vector.broadcast %cst_38 : f32 to vector<48x96xf32>
    %95 = arith.subf %57, %94 : vector<48x96xf32>
    %96 = arith.mulf %95, %95 : vector<48x96xf32>
    %cst_39 = arith.constant -5.000000e+01 : f32
    %97 = vector.broadcast %cst_39 : f32 to vector<48x96xf32>
    %98 = arith.mulf %97, %96 : vector<48x96xf32>
    %99 = math.exp %98 : vector<48x96xf32>
    %cst_40 = arith.constant 5.000000e-01 : f32
    %100 = vector.broadcast %cst_40 : f32 to vector<48x96xf32>
    %101 = arith.subf %57, %100 : vector<48x96xf32>
    %102 = arith.mulf %101, %101 : vector<48x96xf32>
    %cst_41 = arith.constant -5.000000e+01 : f32
    %103 = vector.broadcast %cst_41 : f32 to vector<48x96xf32>
    %104 = arith.mulf %103, %102 : vector<48x96xf32>
    %105 = math.exp %104 : vector<48x96xf32>
    %cst_42 = arith.constant 0.699999988 : f32
    %106 = vector.broadcast %cst_42 : f32 to vector<48x96xf32>
    %107 = arith.subf %57, %106 : vector<48x96xf32>
    %108 = arith.mulf %107, %107 : vector<48x96xf32>
    %cst_43 = arith.constant -5.000000e+01 : f32
    %109 = vector.broadcast %cst_43 : f32 to vector<48x96xf32>
    %110 = arith.mulf %109, %108 : vector<48x96xf32>
    %111 = math.exp %110 : vector<48x96xf32>
    %cst_44 = arith.constant 0.899999976 : f32
    %112 = vector.broadcast %cst_44 : f32 to vector<48x96xf32>
    %113 = arith.subf %57, %112 : vector<48x96xf32>
    %114 = arith.mulf %113, %113 : vector<48x96xf32>
    %cst_45 = arith.constant -5.000000e+01 : f32
    %115 = vector.broadcast %cst_45 : f32 to vector<48x96xf32>
    %116 = arith.mulf %115, %114 : vector<48x96xf32>
    %117 = math.exp %116 : vector<48x96xf32>
    %cst_46 = arith.constant 1.000000e+00 : f32
    %118 = vector.broadcast %cst_46 : f32 to vector<48x96xf32>
    %119 = arith.subf %57, %118 : vector<48x96xf32>
    %120 = arith.mulf %119, %119 : vector<48x96xf32>
    %cst_47 = arith.constant -5.000000e+05 : f32
    %121 = vector.broadcast %cst_47 : f32 to vector<48x96xf32>
    %122 = arith.mulf %121, %120 : vector<48x96xf32>
    %123 = math.exp %122 : vector<48x96xf32>
    %124 = tpu.concatenate %63, %69, %75, %81, %87, %93, %99, %105, %111, %117, %123 in 0 : vector<48x96xf32>, vector<48x96xf32>, vector<48x96xf32>, vector<48x96xf32>, vector<48x96xf32>, vector<48x96xf32>, vector<48x96xf32>, vector<48x96xf32>, vector<48x96xf32>, vector<48x96xf32>, vector<48x96xf32> -> vector<528x96xf32>
    %c0_48 = arith.constant 0 : index
    %c0_49 = arith.constant 0 : index
    %125 = vector.load %arg4[%c0_48, %c0_49] : memref<96x6xf32, #tpu.memory_space<vmem>>, vector<96x6xf32>
    %cst_50 = arith.constant dense<0.000000e+00> : vector<528x6xf32>
    %126 = tpu.matmul %124, %125, %cst_50 {dimension_numbers = #tpu.dot_dimension_numbers<[1], [0], [0], [1], [0, 0, 1, 1], [], []>} : vector<528x96xf32>, vector<96x6xf32>, vector<528x6xf32> -> vector<528x6xf32>
    %127 = math.log1p %126 : vector<528x6xf32>
    %c0_51 = arith.constant 0 : index
    %c0_52 = arith.constant 0 : index
    %128 = vector.load %arg5[%c0_51, %c0_52] : memref<528x6xf32, #tpu.memory_space<vmem>>, vector<528x6xf32>
    %129 = arith.mulf %127, %128 : vector<528x6xf32>
    %cst_53 = arith.constant dense<0.000000e+00> : vector<6xf32>
    %130 = vector.multi_reduction <add>, %129, %cst_53 [0] : vector<528x6xf32> to vector<6xf32>
    %131 = vector.shape_cast %130 : vector<6xf32> to vector<1x6xf32>
    %c0_54 = arith.constant 0 : index
    %c0_55 = arith.constant 0 : index
    %132 = vector.load %arg6[%c0_54, %c0_55] : memref<1x6xf32, #tpu.memory_space<vmem>>, vector<1x6xf32>
    tpu.vector_store %arg6[%c0_54, %c0_55], %131 {strides = array<i32>} : memref<1x6xf32, #tpu.memory_space<vmem>>, vector<1x6xf32>,
    return
  }
  func.func @transform_0(%arg0: i32) -> (i32, i32) {
    %c0_i32 = arith.constant 0 : i32
    %c0_i32_0 = arith.constant 0 : i32
    %c0_i32_1 = arith.constant 0 : i32
    return %c0_i32, %c0_i32_0 : i32, i32
  }
  func.func @transform_1(%arg0: i32) -> (i32, i32, i32) {
    %c0_i32 = arith.constant 0 : i32
    %c0_i32_0 = arith.constant 0 : i32
    %c0_i32_1 = arith.constant 0 : i32
    %c0_i32_2 = arith.constant 0 : i32
    return %c0_i32, %c0_i32_0, %c0_i32_1 : i32, i32, i32
  }
  func.func @transform_2(%arg0: i32) -> (i32, i32, i32) {
    %c0_i32 = arith.constant 0 : i32
    %c0_i32_0 = arith.constant 0 : i32
    %c0_i32_1 = arith.constant 0 : i32
    %c0_i32_2 = arith.constant 0 : i32
    return %c0_i32, %c0_i32_0, %c0_i32_1 : i32, i32, i32
  }
  func.func @transform_3(%arg0: i32) -> (i32, i32) {
    %c0_i32 = arith.constant 0 : i32
    %c0_i32_0 = arith.constant 0 : i32
    %c0_i32_1 = arith.constant 0 : i32
    return %c0_i32, %c0_i32_0 : i32, i32
  }
  func.func @transform_4(%arg0: i32) -> (i32, i32) {
    %c0_i32 = arith.constant 0 : i32
    %c0_i32_0 = arith.constant 0 : i32
    %c0_i32_1 = arith.constant 0 : i32
    return %c0_i32, %c0_i32_0 : i32, i32
  }
  func.func @transform_5(%arg0: i32) -> (i32, i32) {
    %c0_i32 = arith.constant 0 : i32
    %c0_i32_0 = arith.constant 0 : i32
    %c0_i32_1 = arith.constant 0 : i32
    return %c0_i32, %c0_i32_0 : i32, i32
  }
}

</mosaic_0001>

<llo_original>
// kernel: conv_knrm_forward.1
$region0: #{conv_knrm_forward.1}
  #allocation0 [shape = 'u32[]', space=smem, size = 0x4, offset = 0x4, fixed_abs, tag = 'smem constant byte address 0x4 - core index']
  #allocation1 [shape = 'u32[144,128]{1,0:T(1,128)}', space=vmem, size = 0x12000, scoped, tag = 'internal scratch']
  %s0 = inlined_call_operand.vmem [shape: f32[48,128], index: 0, kind: input, shape index: {}]
  %s1 = inlined_call_operand.vmem [shape: f32[3,128,32], index: 1, kind: input, shape index: {}]
  %s2 = inlined_call_operand.vmem [shape: f32[3,1,32], index: 2, kind: input, shape index: {}]
  %s3 = inlined_call_operand.vmem [shape: f32[96,6], index: 3, kind: input, shape index: {}]
  %s4 = inlined_call_operand.vmem [shape: f32[528,6], index: 4, kind: input, shape index: {}]
  %s5 = inlined_call_operand.vmem [shape: f32[1,6], index: 5, kind: output, shape index: {}]
  %s6 = sld [smem:[#allocation0]]
  $region30: #{conv_knrm_forward.1} parent=0
    _
  %s8 = ssub.s32 1, %s6
  %s9 = scalar_select 0, %s8, %s6
  // Predicated region
  $region2: #{conv_knrm_forward.1} parent=0 // pred_check
    _
  $region3: #{conv_knrm_forward.1} parent=0 // pred_check_branch
    %11 = sbr.rel (0) target = $region5
  $region4: #{conv_knrm_forward.1} parent=0 // pred_region
    _
  $region5: #{conv_knrm_forward.1} parent=0 // pred_fallthru
    _
  // Predicated region
  $region6: #{conv_knrm_forward.1} parent=0 // pred_check
    _
  $region7: #{conv_knrm_forward.1} parent=0 // pred_check_branch
    %13 = sbr.rel (0) target = $region9
  $region8: #{conv_knrm_forward.1} parent=0 // pred_region
    _
  $region9: #{conv_knrm_forward.1} parent=0 // pred_fallthru
    _
  // Predicated region
  $region10: #{conv_knrm_forward.1} parent=0 // pred_check
    _
  $region11: #{conv_knrm_forward.1} parent=0 // pred_check_branch
    %15 = sbr.rel (0) target = $region13
  $region12: #{conv_knrm_forward.1} parent=0 // pred_region
    _
  $region13: #{conv_knrm_forward.1} parent=0 // pred_fallthru
    _
  // Predicated region
  $region14: #{conv_knrm_forward.1} parent=0 // pred_check
    _
  $region15: #{conv_knrm_forward.1} parent=0 // pred_check_branch
    %17 = sbr.rel (0) target = $region17
  $region16: #{conv_knrm_forward.1} parent=0 // pred_region
    _
  $region17: #{conv_knrm_forward.1} parent=0 // pred_fallthru
    _
  // Predicated region
  $region18: #{conv_knrm_forward.1} parent=0 // pred_check
    _
  $region19: #{conv_knrm_forward.1} parent=0 // pred_check_branch
    %19 = sbr.rel (0) target = $region21
  $region20: #{conv_knrm_forward.1} parent=0 // pred_region
    _
  $region21: #{conv_knrm_forward.1} parent=0 // pred_fallthru
    _
  %v20 = vld [vmem:[%s0] sm:$0xff]
  %v21 = vld [vmem:[%s0 + $0x8] sm:$0xff]
  %v22 = vld [vmem:[%s0 + $0x10] sm:$0xff]
  %v23 = vld [vmem:[%s0 + $0x18] sm:$0xff]
  %v24 = vld [vmem:[%s0 + $0x20] sm:$0xff]
  %v25 = vld [vmem:[%s0 + $0x28] sm:$0xff]
  %v26 = vld [vmem:[%s1] sm:$0xff]
  %v27 = vld [vmem:[%s1 + $0x8] sm:$0xff]
  %v28 = vld [vmem:[%s1 + $0x10] sm:$0xff]
  %v29 = vld [vmem:[%s1 + $0x18] sm:$0xff]
  %v30 = vld [vmem:[%s1 + $0x20] sm:$0xff]
  %v31 = vld [vmem:[%s1 + $0x28] sm:$0xff]
  %v32 = vld [vmem:[%s1 + $0x30] sm:$0xff]
  %v33 = vld [vmem:[%s1 + $0x38] sm:$0xff]
  %v34 = vld [vmem:[%s1 + $0x40] sm:$0xff]
  %v35 = vld [vmem:[%s1 + $0x48] sm:$0xff]
  %v36 = vld [vmem:[%s1 + $0x50] sm:$0xff]
  %v37 = vld [vmem:[%s1 + $0x58] sm:$0xff]
  %v38 = vld [vmem:[%s1 + $0x60] sm:$0xff]
  %v39 = vld [vmem:[%s1 + $0x68] sm:$0xff]
  %v40 = vld [vmem:[%s1 + $0x70] sm:$0xff]
  %v41 = vld [vmem:[%s1 + $0x78] sm:$0xff]
  %v42 = vld [vmem:[%s2] sm:$0x1]
  %v44 = vlaneseq
  %v45 = vshrl.u32 %v44, 7
  %v46 = vsub.s32 0, %v45
  %v47 = vrot.slane %v42, %v46
  %49 = vmatprep.subr.mxu0 0.0
  %50 = vmatpush1.msra.mxu0 %v41
  %51 = vmatprep.subr.mxu0 0.0
  %52 = vmatpush1.msra.mxu0 %v40
  %53 = vmatprep.subr.mxu0 0.0
  %54 = vmatpush1.msra.mxu0 %v39
  %55 = vmatprep.subr.mxu0 0.0
  %56 = vmatpush1.msra.mxu0 %v38
  %57 = vmatprep.subr.mxu0 0.0
  %58 = vmatpush1.msra.mxu0 %v37
  %59 = vmatprep.subr.mxu0 0.0
  %60 = vmatpush1.msra.mxu0 %v36
  %61 = vmatprep.subr.mxu0 0.0
  %62 = vmatpush1.msra.mxu0 %v35
  %63 = vmatprep.subr.mxu0 0.0
  %64 = vmatpush1.msra.mxu0 %v34
  %65 = vmatprep.subr.mxu0 0.0
  %66 = vmatpush1.msra.mxu0 %v33
  %67 = vmatprep.subr.mxu0 0.0
  %68 = vmatpush1.msra.mxu0 %v32
  %69 = vmatprep.subr.mxu0 0.0
  %70 = vmatpush1.msra.mxu0 %v31
  %71 = vmatprep.subr.mxu0 0.0
  %72 = vmatpush1.msra.mxu0 %v30
  %73 = vmatprep.subr.mxu0 0.0
  %74 = vmatpush1.msra.mxu0 %v29
  %75 = vmatprep.subr.mxu0 0.0
  %76 = vmatpush1.msra.mxu0 %v28
  %77 = vmatprep.subr.mxu0 0.0
  %78 = vmatpush1.msra.mxu0 %v27
  %79 = vmatprep.subr.mxu0 0.0
  %80 = vmatpush1.msra.mxu0 %v26
  %81 = vmatprep.subr.mxu0 0.0
  %82 = vmatpush2.msra.mxu0 0.0
  %83 = vmatprep.subr.mxu0 0.0
  %84 = vmatpush2.msra.mxu0 0.0
  %85 = vmatprep.subr.mxu0 0.0
  %86 = vmatpush2.msra.mxu0 0.0
  %87 = vmatprep.subr.mxu0 0.0
  %88 = vmatpush2.msra.mxu0 0.0
  %89 = vmatprep.subr.mxu0 0.0
  %90 = vmatpush2.msra.mxu0 0.0
  %91 = vmatprep.subr.mxu0 0.0
  %92 = vmatpush2.msra.mxu0 0.0
  %93 = vmatprep.subr.mxu0 0.0
  %94 = vmatpush2.msra.mxu0 0.0
  %95 = vmatprep.subr.mxu0 0.0
  %96 = vmatpush2.msra.mxu0 0.0
  %97 = vmatprep.subr.mxu0 0.0
  %98 = vmatpush2.msra.mxu0 0.0
  %99 = vmatprep.subr.mxu0 0.0
  %100 = vmatpush2.msra.mxu0 0.0
  %101 = vmatprep.subr.mxu0 0.0
  %102 = vmatpush2.msra.mxu0 0.0
  %103 = vmatprep.subr.mxu0 0.0
  %104 = vmatpush2.msra.mxu0 0.0
  %105 = vmatprep.subr.mxu0 0.0
  %106 = vmatpush2.msra.mxu0 0.0
  %107 = vmatprep.subr.mxu0 0.0
  %108 = vmatpush2.msra.mxu0 0.0
  %109 = vmatprep.subr.mxu0 0.0
  %110 = vmatpush2.msra.mxu0 0.0
  %111 = vmatprep.subr.mxu0 0.0
  %112 = vmatpush2.msra.mxu0 0.0
  %113 = vmatprep.mubr.f32.mxu0 0.0
  %114 = vmatmul.mubr.f32.gmra.mxu0 %v20
  %v115 = vpop.f32.mrf.mxu0
  %v116 = vadd.f32 %v47, %v115
  %v117 = vpop.f32.mrf.mxu0
  %118 = vmatprep.mubr.f32.mxu0 0.0
  %119 = vmatmul.mubr.f32.gmra.mxu0 %v21
  %v120 = vpop.f32.mrf.mxu0
  %v121 = vadd.f32 %v47, %v120
  %v122 = vpop.f32.mrf.mxu0
  %123 = vmatprep.mubr.f32.mxu0 0.0
  %124 = vmatmul.mubr.f32.gmra.mxu0 %v22
  %v125 = vpop.f32.mrf.mxu0
  %v126 = vadd.f32 %v47, %v125
  %v127 = vpop.f32.mrf.mxu0
  %128 = vmatprep.mubr.f32.mxu0 0.0
  %129 = vmatmul.mubr.f32.gmra.mxu0 %v23
  %v130 = vpop.f32.mrf.mxu0
  %v131 = vadd.f32 %v47, %v130
  %v132 = vpop.f32.mrf.mxu0
  %133 = vmatprep.mubr.f32.mxu0 0.0
  %134 = vmatmul.mubr.f32.gmra.mxu0 %v24
  %v135 = vpop.f32.mrf.mxu0
  %v136 = vadd.f32 %v47, %v135
  %v137 = vpop.f32.mrf.mxu0
  %138 = vmatprep.mubr.f32.mxu0 0.0
  %139 = vmatmul.mubr.f32.gmra.mxu0 %v25
  %v140 = vpop.f32.mrf.mxu0
  %v141 = vadd.f32 %v47, %v140
  %v142 = vpop.f32.mrf.mxu0
  %143 = vdwg.mxu0
  %v144 = vtanh.pop %v116
  %v145 = vtanh.pop %v121
  %v146 = vtanh.pop %v126
  %v147 = vtanh.pop %v131
  %v148 = vtanh.pop %v136
  %v149 = vtanh.pop %v141
  %v150 = vmul.f32 %v144, %v144
  %v151 = vmul.f32 %v145, %v145
  %v152 = vmul.f32 %v146, %v146
  %v153 = vmul.f32 %v147, %v147
  %v154 = vmul.f32 %v148, %v148
  %v155 = vmul.f32 %v149, %v149
  %vm156 = vcmask 261120
  %v157 = vsel %vm156, %v150, 0.0
  %158 = vadd.xlane.f32.xlu0 %v157
  %v159 = vpop.xlane.xlu0 %158
  %v160 = vsel %vm156, %v151, 0.0
  %161 = vadd.xlane.f32.xlu0 %v160
  %v162 = vpop.xlane.xlu0 %161
  %v163 = vsel %vm156, %v152, 0.0
  %164 = vadd.xlane.f32.xlu0 %v163
  %v165 = vpop.xlane.xlu0 %164
  %v166 = vsel %vm156, %v153, 0.0
  %167 = vadd.xlane.f32.xlu0 %v166
  %v168 = vpop.xlane.xlu0 %167
  %v169 = vsel %vm156, %v154, 0.0
  %170 = vadd.xlane.f32.xlu0 %v169
  %v171 = vpop.xlane.xlu0 %170
  %v172 = vsel %vm156, %v155, 0.0
  %173 = vadd.xlane.f32.xlu0 %v172
  %v174 = vpop.xlane.xlu0 %173
  %v175 = vmax.f32 %v159, 1e-24
  %v176 = vmax.f32 %v162, 1e-24
  %v177 = vmax.f32 %v165, 1e-24
  %v178 = vmax.f32 %v168, 1e-24
  %v179 = vmax.f32 %v171, 1e-24
  %v180 = vmax.f32 %v174, 1e-24
  %v181 = vrsqrt.pop %v175
  %v182 = vrsqrt.pop %v176
  %v183 = vrsqrt.pop %v177
  %v184 = vrsqrt.pop %v178
  %v185 = vrsqrt.pop %v179
  %v186 = vrsqrt.pop %v180
  %v187 = vmul.f32 %v144, %v181
  %v188 = vmul.f32 %v145, %v182
  %v189 = vmul.f32 %v146, %v183
  %v190 = vmul.f32 %v147, %v184
  %v191 = vmul.f32 %v148, %v185
  %v192 = vmul.f32 %v149, %v186
  %s193 = scalar_lea.vmem %s1, 128
  %v194 = vld [vmem:[%s193] sm:$0xff]
  %v195 = vld [vmem:[%s193 + $0x8] sm:$0xff]
  %v196 = vld [vmem:[%s193 + $0x10] sm:$0xff]
  %v197 = vld [vmem:[%s193 + $0x18] sm:$0xff]
  %v198 = vld [vmem:[%s193 + $0x20] sm:$0xff]
  %v199 = vld [vmem:[%s193 + $0x28] sm:$0xff]
  %v200 = vld [vmem:[%s193 + $0x30] sm:$0xff]
  %v201 = vld [vmem:[%s193 + $0x38] sm:$0xff]
  %v202 = vld [vmem:[%s193 + $0x40] sm:$0xff]
  %v203 = vld [vmem:[%s193 + $0x48] sm:$0xff]
  %v204 = vld [vmem:[%s193 + $0x50] sm:$0xff]
  %v205 = vld [vmem:[%s193 + $0x58] sm:$0xff]
  %v206 = vld [vmem:[%s193 + $0x60] sm:$0xff]
  %v207 = vld [vmem:[%s193 + $0x68] sm:$0xff]
  %v208 = vld [vmem:[%s193 + $0x70] sm:$0xff]
  %v209 = vld [vmem:[%s193 + $0x78] sm:$0xff]
  %s210 = scalar_lea.vmem %s2, 1
  %v211 = vld [vmem:[%s210] sm:$0x1]
  %v213 = vlaneseq
  %v214 = vshrl.u32 %v213, 7
  %v215 = vsub.s32 0, %v214
  %v216 = vrot.slane %v211, %v215
  %218 = vmatprep.subr.mxu0 0.0
  %219 = vmatpush1.msra.mxu0 %v209
  %220 = vmatprep.subr.mxu0 0.0
  %221 = vmatpush1.msra.mxu0 %v208
  %222 = vmatprep.subr.mxu0 0.0
  %223 = vmatpush1.msra.mxu0 %v207
  %224 = vmatprep.subr.mxu0 0.0
  %225 = vmatpush1.msra.mxu0 %v206
  %226 = vmatprep.subr.mxu0 0.0
  %227 = vmatpush1.msra.mxu0 %v205
  %228 = vmatprep.subr.mxu0 0.0
  %229 = vmatpush1.msra.mxu0 %v204
  %230 = vmatprep.subr.mxu0 0.0
  %231 = vmatpush1.msra.mxu0 %v203
  %232 = vmatprep.subr.mxu0 0.0
  %233 = vmatpush1.msra.mxu0 %v202
  %234 = vmatprep.subr.mxu0 0.0
  %235 = vmatpush1.msra.mxu0 %v201
  %236 = vmatprep.subr.mxu0 0.0
  %237 = vmatpush1.msra.mxu0 %v200
  %238 = vmatprep.subr.mxu0 0.0
  %239 = vmatpush1.msra.mxu0 %v199
  %240 = vmatprep.subr.mxu0 0.0
  %241 = vmatpush1.msra.mxu0 %v198
  %242 = vmatprep.subr.mxu0 0.0
  %243 = vmatpush1.msra.mxu0 %v197
  %244 = vmatprep.subr.mxu0 0.0
  %245 = vmatpush1.msra.mxu0 %v196
  %246 = vmatprep.subr.mxu0 0.0
  %247 = vmatpush1.msra.mxu0 %v195
  %248 = vmatprep.subr.mxu0 0.0
  %249 = vmatpush1.msra.mxu0 %v194
  %250 = vmatprep.subr.mxu0 0.0
  %251 = vmatpush2.msra.mxu0 0.0
  %252 = vmatprep.subr.mxu0 0.0
  %253 = vmatpush2.msra.mxu0 0.0
  %254 = vmatprep.subr.mxu0 0.0
  %255 = vmatpush2.msra.mxu0 0.0
  %256 = vmatprep.subr.mxu0 0.0
  %257 = vmatpush2.msra.mxu0 0.0
  %258 = vmatprep.subr.mxu0 0.0
  %259 = vmatpush2.msra.mxu0 0.0
  %260 = vmatprep.subr.mxu0 0.0
  %261 = vmatpush2.msra.mxu0 0.0
  %262 = vmatprep.subr.mxu0 0.0
  %263 = vmatpush2.msra.mxu0 0.0
  %264 = vmatprep.subr.mxu0 0.0
  %265 = vmatpush2.msra.mxu0 0.0
  %266 = vmatprep.subr.mxu0 0.0
  %267 = vmatpush2.msra.mxu0 0.0
  %268 = vmatprep.subr.mxu0 0.0
  %269 = vmatpush2.msra.mxu0 0.0
  %270 = vmatprep.subr.mxu0 0.0
  %271 = vmatpush2.msra.mxu0 0.0
  %272 = vmatprep.subr.mxu0 0.0
  %273 = vmatpush2.msra.mxu0 0.0
  %274 = vmatprep.subr.mxu0 0.0
  %275 = vmatpush2.msra.mxu0 0.0
  %276 = vmatprep.subr.mxu0 0.0
  %277 = vmatpush2.msra.mxu0 0.0
  %278 = vmatprep.subr.mxu0 0.0
  %279 = vmatpush2.msra.mxu0 0.0
  %280 = vmatprep.subr.mxu0 0.0
  %281 = vmatpush2.msra.mxu0 0.0
  %282 = vmatprep.mubr.f32.mxu0 0.0
  %283 = vmatmul.mubr.f32.gmra.mxu0 %v20
  %v284 = vpop.f32.mrf.mxu0
  %v285 = vadd.f32 %v216, %v284
  %v286 = vpop.f32.mrf.mxu0
  %287 = vmatprep.mubr.f32.mxu0 0.0
  %288 = vmatmul.mubr.f32.gmra.mxu0 %v21
  %v289 = vpop.f32.mrf.mxu0
  %v290 = vadd.f32 %v216, %v289
  %v291 = vpop.f32.mrf.mxu0
  %292 = vmatprep.mubr.f32.mxu0 0.0
  %293 = vmatmul.mubr.f32.gmra.mxu0 %v22
  %v294 = vpop.f32.mrf.mxu0
  %v295 = vadd.f32 %v216, %v294
  %v296 = vpop.f32.mrf.mxu0
  %297 = vmatprep.mubr.f32.mxu0 0.0
  %298 = vmatmul.mubr.f32.gmra.mxu0 %v23
  %v299 = vpop.f32.mrf.mxu0
  %v300 = vadd.f32 %v216, %v299
  %v301 = vpop.f32.mrf.mxu0
  %302 = vmatprep.mubr.f32.mxu0 0.0
  %303 = vmatmul.mubr.f32.gmra.mxu0 %v24
  %v304 = vpop.f32.mrf.mxu0
  %v305 = vadd.f32 %v216, %v304
  %v306 = vpop.f32.mrf.mxu0
  %307 = vmatprep.mubr.f32.mxu0 0.0
  %308 = vmatmul.mubr.f32.gmra.mxu0 %v25
  %v309 = vpop.f32.mrf.mxu0
  %v310 = vadd.f32 %v216, %v309
  %v311 = vpop.f32.mrf.mxu0
  %312 = vdwg.mxu0
  %v313 = vtanh.pop %v285
  %v314 = vtanh.pop %v290
  %v315 = vtanh.pop %v295
  %v316 = vtanh.pop %v300
  %v317 = vtanh.pop %v305
  %v318 = vtanh.pop %v310
  %v319 = vmul.f32 %v313, %v313
  %v320 = vmul.f32 %v314, %v314
  %v321 = vmul.f32 %v315, %v315
  %v322 = vmul.f32 %v316, %v316
  %v323 = vmul.f32 %v317, %v317
  %v324 = vmul.f32 %v318, %v318
  %v325 = vsel %vm156, %v319, 0.0
  %326 = vadd.xlane.f32.xlu0 %v325
  %v327 = vpop.xlane.xlu0 %326
  %v328 = vsel %vm156, %v320, 0.0
  %329 = vadd.xlane.f32.xlu0 %v328
  %v330 = vpop.xlane.xlu0 %329
  %v331 = vsel %vm156, %v321, 0.0
  %332 = vadd.xlane.f32.xlu0 %v331
  %v333 = vpop.xlane.xlu0 %332
  %v334 = vsel %vm156, %v322, 0.0
  %335 = vadd.xlane.f32.xlu0 %v334
  %v336 = vpop.xlane.xlu0 %335
  %v337 = vsel %vm156, %v323, 0.0
  %338 = vadd.xlane.f32.xlu0 %v337
  %v339 = vpop.xlane.xlu0 %338
  %v340 = vsel %vm156, %v324, 0.0
  %341 = vadd.xlane.f32.xlu0 %v340
  %v342 = vpop.xlane.xlu0 %341
  %v343 = vmax.f32 %v327, 1e-24
  %v344 = vmax.f32 %v330, 1e-24
  %v345 = vmax.f32 %v333, 1e-24
  %v346 = vmax.f32 %v336, 1e-24
  %v347 = vmax.f32 %v339, 1e-24
  %v348 = vmax.f32 %v342, 1e-24
  %v349 = vrsqrt.pop %v343
  %v350 = vrsqrt.pop %v344
  %v351 = vrsqrt.pop %v345
  %v352 = vrsqrt.pop %v346
  %v353 = vrsqrt.pop %v347
  %v354 = vrsqrt.pop %v348
  %v355 = vmul.f32 %v313, %v349
  %v356 = vmul.f32 %v314, %v350
  %v357 = vmul.f32 %v315, %v351
  %v358 = vmul.f32 %v316, %v352
  %v359 = vmul.f32 %v317, %v353
  %v360 = vmul.f32 %v318, %v354
  %s361 = scalar_lea.vmem %s1, 256
  %v362 = vld [vmem:[%s361] sm:$0xff]
  %v363 = vld [vmem:[%s361 + $0x8] sm:$0xff]
  %v364 = vld [vmem:[%s361 + $0x10] sm:$0xff]
  %v365 = vld [vmem:[%s361 + $0x18] sm:$0xff]
  %v366 = vld [vmem:[%s361 + $0x20] sm:$0xff]
  %v367 = vld [vmem:[%s361 + $0x28] sm:$0xff]
  %v368 = vld [vmem:[%s361 + $0x30] sm:$0xff]
  %v369 = vld [vmem:[%s361 + $0x38] sm:$0xff]
  %v370 = vld [vmem:[%s361 + $0x40] sm:$0xff]
  %v371 = vld [vmem:[%s361 + $0x48] sm:$0xff]
  %v372 = vld [vmem:[%s361 + $0x50] sm:$0xff]
  %v373 = vld [vmem:[%s361 + $0x58] sm:$0xff]
  %v374 = vld [vmem:[%s361 + $0x60] sm:$0xff]
  %v375 = vld [vmem:[%s361 + $0x68] sm:$0xff]
  %v376 = vld [vmem:[%s361 + $0x70] sm:$0xff]
  %v377 = vld [vmem:[%s361 + $0x78] sm:$0xff]
  %s378 = scalar_lea.vmem %s2, 2
  %v379 = vld [vmem:[%s378] sm:$0x1]
  %v381 = vlaneseq
  %v382 = vshrl.u32 %v381, 7
  %v383 = vsub.s32 0, %v382
  %v384 = vrot.slane %v379, %v383
  %386 = vmatprep.subr.mxu0 0.0
  %387 = vmatpush1.msra.mxu0 %v377
  %388 = vmatprep.subr.mxu0 0.0
  %389 = vmatpush1.msra.mxu0 %v376
  %390 = vmatprep.subr.mxu0 0.0
  %391 = vmatpush1.msra.mxu0 %v375
  %392 = vmatprep.subr.mxu0 0.0
  %393 = vmatpush1.msra.mxu0 %v374
  %394 = vmatprep.subr.mxu0 0.0
  %395 = vmatpush1.msra.mxu0 %v373
  %396 = vmatprep.subr.mxu0 0.0
  %397 = vmatpush1.msra.mxu0 %v372
  %398 = vmatprep.subr.mxu0 0.0
  %399 = vmatpush1.msra.mxu0 %v371
  %400 = vmatprep.subr.mxu0 0.0
  %401 = vmatpush1.msra.mxu0 %v370
  %402 = vmatprep.subr.mxu0 0.0
  %403 = vmatpush1.msra.mxu0 %v369
  %404 = vmatprep.subr.mxu0 0.0
  %405 = vmatpush1.msra.mxu0 %v368
  %406 = vmatprep.subr.mxu0 0.0
  %407 = vmatpush1.msra.mxu0 %v367
  %408 = vmatprep.subr.mxu0 0.0
  %409 = vmatpush1.msra.mxu0 %v366
  %410 = vmatprep.subr.mxu0 0.0
  %411 = vmatpush1.msra.mxu0 %v365
  %412 = vmatprep.subr.mxu0 0.0
  %413 = vmatpush1.msra.mxu0 %v364
  %414 = vmatprep.subr.mxu0 0.0
  %415 = vmatpush1.msra.mxu0 %v363
  %416 = vmatprep.subr.mxu0 0.0
  %417 = vmatpush1.msra.mxu0 %v362
  %418 = vmatprep.subr.mxu0 0.0
  %419 = vmatpush2.msra.mxu0 0.0
  %420 = vmatprep.subr.mxu0 0.0
  %421 = vmatpush2.msra.mxu0 0.0
  %422 = vmatprep.subr.mxu0 0.0
  %423 = vmatpush2.msra.mxu0 0.0
  %424 = vmatprep.subr.mxu0 0.0
  %425 = vmatpush2.msra.mxu0 0.0
  %426 = vmatprep.subr.mxu0 0.0
  %427 = vmatpush2.msra.mxu0 0.0
  %428 = vmatprep.subr.mxu0 0.0
  %429 = vmatpush2.msra.mxu0 0.0
  %430 = vmatprep.subr.mxu0 0.0
  %431 = vmatpush2.msra.mxu0 0.0
  %432 = vmatprep.subr.mxu0 0.0
  %433 = vmatpush2.msra.mxu0 0.0
  %434 = vmatprep.subr.mxu0 0.0
  %435 = vmatpush2.msra.mxu0 0.0
  %436 = vmatprep.subr.mxu0 0.0
  %437 = vmatpush2.msra.mxu0 0.0
  %438 = vmatprep.subr.mxu0 0.0
  %439 = vmatpush2.msra.mxu0 0.0
  %440 = vmatprep.subr.mxu0 0.0
  %441 = vmatpush2.msra.mxu0 0.0
  %442 = vmatprep.subr.mxu0 0.0
  %443 = vmatpush2.msra.mxu0 0.0
  %444 = vmatprep.subr.mxu0 0.0
  %445 = vmatpush2.msra.mxu0 0.0
  %446 = vmatprep.subr.mxu0 0.0
  %447 = vmatpush2.msra.mxu0 0.0
  %448 = vmatprep.subr.mxu0 0.0
  %449 = vmatpush2.msra.mxu0 0.0
  %450 = vmatprep.mubr.f32.mxu0 0.0
  %451 = vmatmul.mubr.f32.gmra.mxu0 %v20
  %v452 = vpop.f32.mrf.mxu0
  %v453 = vadd.f32 %v384, %v452
  %v454 = vpop.f32.mrf.mxu0
  %455 = vmatprep.mubr.f32.mxu0 0.0
  %456 = vmatmul.mubr.f32.gmra.mxu0 %v21
  %v457 = vpop.f32.mrf.mxu0
  %v458 = vadd.f32 %v384, %v457
  %v459 = vpop.f32.mrf.mxu0
  %460 = vmatprep.mubr.f32.mxu0 0.0
  %461 = vmatmul.mubr.f32.gmra.mxu0 %v22
  %v462 = vpop.f32.mrf.mxu0
  %v463 = vadd.f32 %v384, %v462
  %v464 = vpop.f32.mrf.mxu0
  %465 = vmatprep.mubr.f32.mxu0 0.0
  %466 = vmatmul.mubr.f32.gmra.mxu0 %v23
  %v467 = vpop.f32.mrf.mxu0
  %v468 = vadd.f32 %v384, %v467
  %v469 = vpop.f32.mrf.mxu0
  %470 = vmatprep.mubr.f32.mxu0 0.0
  %471 = vmatmul.mubr.f32.gmra.mxu0 %v24
  %v472 = vpop.f32.mrf.mxu0
  %v473 = vadd.f32 %v384, %v472
  %v474 = vpop.f32.mrf.mxu0
  %475 = vmatprep.mubr.f32.mxu0 0.0
  %476 = vmatmul.mubr.f32.gmra.mxu0 %v25
  %v477 = vpop.f32.mrf.mxu0
  %v478 = vadd.f32 %v384, %v477
  %v479 = vpop.f32.mrf.mxu0
  %480 = vdwg.mxu0
  %v481 = vtanh.pop %v453
  %v482 = vtanh.pop %v458
  %v483 = vtanh.pop %v463
  %v484 = vtanh.pop %v468
  %v485 = vtanh.pop %v473
  %v486 = vtanh.pop %v478
  %v487 = vmul.f32 %v481, %v481
  %v488 = vmul.f32 %v482, %v482
  %v489 = vmul.f32 %v483, %v483
  %v490 = vmul.f32 %v484, %v484
  %v491 = vmul.f32 %v485, %v485
  %v492 = vmul.f32 %v486, %v486
  %v493 = vsel %vm156, %v487, 0.0
  %494 = vadd.xlane.f32.xlu0 %v493
  %v495 = vpop.xlane.xlu0 %494
  %v496 = vsel %vm156, %v488, 0.0
  %497 = vadd.xlane.f32.xlu0 %v496
  %v498 = vpop.xlane.xlu0 %497
  %v499 = vsel %vm156, %v489, 0.0
  %500 = vadd.xlane.f32.xlu0 %v499
  %v501 = vpop.xlane.xlu0 %500
  %v502 = vsel %vm156, %v490, 0.0
  %503 = vadd.xlane.f32.xlu0 %v502
  %v504 = vpop.xlane.xlu0 %503
  %v505 = vsel %vm156, %v491, 0.0
  %506 = vadd.xlane.f32.xlu0 %v505
  %v507 = vpop.xlane.xlu0 %506
  %v508 = vsel %vm156, %v492, 0.0
  %509 = vadd.xlane.f32.xlu0 %v508
  %v510 = vpop.xlane.xlu0 %509
  %v511 = vmax.f32 %v495, 1e-24
  %v512 = vmax.f32 %v498, 1e-24
  %v513 = vmax.f32 %v501, 1e-24
  %v514 = vmax.f32 %v504, 1e-24
  %v515 = vmax.f32 %v507, 1e-24
  %v516 = vmax.f32 %v510, 1e-24
  %v517 = vrsqrt.pop %v511
  %v518 = vrsqrt.pop %v512
  %v519 = vrsqrt.pop %v513
  %v520 = vrsqrt.pop %v514
  %v521 = vrsqrt.pop %v515
  %v522 = vrsqrt.pop %v516
  %v523 = vmul.f32 %v481, %v517
  %v524 = vmul.f32 %v482, %v518
  %v525 = vmul.f32 %v483, %v519
  %v526 = vmul.f32 %v484, %v520
  %v527 = vmul.f32 %v485, %v521
  %v528 = vmul.f32 %v486, %v522
  %v530 = vsel %vm156, %v187, 0
  %v533 = vsel %vm156, %v188, 0
  %v536 = vsel %vm156, %v355, 0
  %v539 = vsel %vm156, %v356, 0
  %v542 = vsel %vm156, %v523, 0
  %v545 = vsel %vm156, %v524, 0
  %v548 = vsel %vm156, %v189, 0
  %v551 = vsel %vm156, %v190, 0
  %v554 = vsel %vm156, %v191, 0
  %v557 = vsel %vm156, %v192, 0
  %v560 = vsel %vm156, %v357, 0
  %v563 = vsel %vm156, %v358, 0
  %v566 = vsel %vm156, %v359, 0
  %v569 = vsel %vm156, %v360, 0
  %v572 = vsel %vm156, %v525, 0
  %v575 = vsel %vm156, %v526, 0
  %v578 = vsel %vm156, %v527, 0
  %v581 = vsel %vm156, %v528, 0
  %583 = vmatprep.subr.mxu0 0.0
  %584 = vmatpush1.xpose.msra.mxu0 0.0
  %585 = vmatprep.subr.mxu0 0.0
  %586 = vmatpush1.xpose.msra.mxu0 0.0
  %587 = vmatprep.subr.mxu0 0.0
  %588 = vmatpush1.xpose.msra.mxu0 0.0
  %589 = vmatprep.subr.mxu0 0.0
  %590 = vmatpush1.xpose.msra.mxu0 0.0
  %591 = vmatprep.subr.mxu0 0.0
  %592 = vmatpush1.xpose.msra.mxu0 %v581
  %593 = vmatprep.subr.mxu0 0.0
  %594 = vmatpush1.xpose.msra.mxu0 %v578
  %595 = vmatprep.subr.mxu0 0.0
  %596 = vmatpush1.xpose.msra.mxu0 %v575
  %597 = vmatprep.subr.mxu0 0.0
  %598 = vmatpush1.xpose.msra.mxu0 %v572
  %599 = vmatprep.subr.mxu0 0.0
  %600 = vmatpush1.xpose.msra.mxu0 %v569
  %601 = vmatprep.subr.mxu0 0.0
  %602 = vmatpush1.xpose.msra.mxu0 %v566
  %603 = vmatprep.subr.mxu0 0.0
  %604 = vmatpush1.xpose.msra.mxu0 %v563
  %605 = vmatprep.subr.mxu0 0.0
  %606 = vmatpush1.xpose.msra.mxu0 %v560
  %607 = vmatprep.subr.mxu0 0.0
  %608 = vmatpush1.xpose.msra.mxu0 %v557
  %609 = vmatprep.subr.mxu0 0.0
  %610 = vmatpush1.xpose.msra.mxu0 %v554
  %611 = vmatprep.subr.mxu0 0.0
  %612 = vmatpush1.xpose.msra.mxu0 %v551
  %613 = vmatprep.subr.mxu0 0.0
  %614 = vmatpush1.xpose.msra.mxu0 %v548
  %615 = vmatprep.subr.mxu0 0.0
  %616 = vmatpush2.xpose.msra.mxu0 0.0
  %617 = vmatprep.subr.mxu0 0.0
  %618 = vmatpush2.xpose.msra.mxu0 0.0
  %619 = vmatprep.subr.mxu0 0.0
  %620 = vmatpush2.xpose.msra.mxu0 0.0
  %621 = vmatprep.subr.mxu0 0.0
  %622 = vmatpush2.xpose.msra.mxu0 0.0
  %623 = vmatprep.subr.mxu0 0.0
  %624 = vmatpush2.xpose.msra.mxu0 0.0
  %625 = vmatprep.subr.mxu0 0.0
  %626 = vmatpush2.xpose.msra.mxu0 0.0
  %627 = vmatprep.subr.mxu0 0.0
  %628 = vmatpush2.xpose.msra.mxu0 0.0
  %629 = vmatprep.subr.mxu0 0.0
  %630 = vmatpush2.xpose.msra.mxu0 0.0
  %631 = vmatprep.subr.mxu0 0.0
  %632 = vmatpush2.xpose.msra.mxu0 0.0
  %633 = vmatprep.subr.mxu0 0.0
  %634 = vmatpush2.xpose.msra.mxu0 0.0
  %635 = vmatprep.subr.mxu0 0.0
  %636 = vmatpush2.xpose.msra.mxu0 0.0
  %637 = vmatprep.subr.mxu0 0.0
  %638 = vmatpush2.xpose.msra.mxu0 0.0
  %639 = vmatprep.subr.mxu0 0.0
  %640 = vmatpush2.xpose.msra.mxu0 0.0
  %641 = vmatprep.subr.mxu0 0.0
  %642 = vmatpush2.xpose.msra.mxu0 0.0
  %643 = vmatprep.subr.mxu0 0.0
  %644 = vmatpush2.xpose.msra.mxu0 0.0
  %645 = vmatprep.subr.mxu0 0.0
  %646 = vmatpush2.xpose.msra.mxu0 0.0
  %647 = vmatprep.mubr.f32.mxu0 0.0
  %648 = vmatmul.mubr.f32.gmra.mxu0 %v530
  %v649 = vpop.f32.mrf.mxu0
  %v650 = vadd.f32 0.0, %v649
  %v651 = vpop.f32.mrf.mxu0
  %652 = vmatprep.mubr.f32.mxu0 0.0
  %653 = vmatmul.mubr.f32.gmra.mxu0 %v533
  %v654 = vpop.f32.mrf.mxu0
  %v655 = vadd.f32 0.0, %v654
  %v656 = vpop.f32.mrf.mxu0
  %657 = vmatprep.mubr.f32.mxu0 0.0
  %658 = vmatmul.mubr.f32.gmra.mxu0 %v536
  %v659 = vpop.f32.mrf.mxu0
  %v660 = vadd.f32 0.0, %v659
  %v661 = vpop.f32.mrf.mxu0
  %662 = vmatprep.mubr.f32.mxu0 0.0
  %663 = vmatmul.mubr.f32.gmra.mxu0 %v539
  %v664 = vpop.f32.mrf.mxu0
  %v665 = vadd.f32 0.0, %v664
  %v666 = vpop.f32.mrf.mxu0
  %667 = vmatprep.mubr.f32.mxu0 0.0
  %668 = vmatmul.mubr.f32.gmra.mxu0 %v542
  %v669 = vpop.f32.mrf.mxu0
  %v670 = vadd.f32 0.0, %v669
  %v671 = vpop.f32.mrf.mxu0
  %672 = vmatprep.mubr.f32.mxu0 0.0
  %673 = vmatmul.mubr.f32.gmra.mxu0 %v545
  %v674 = vpop.f32.mrf.mxu0
  %v675 = vadd.f32 0.0, %v674
  %v676 = vpop.f32.mrf.mxu0
  %677 = vdwg.mxu0
  %v678 = vsub.f32 %v650, -0.9
  %v679 = vsub.f32 %v655, -0.9
  %v680 = vsub.f32 %v660, -0.9
  %v681 = vsub.f32 %v665, -0.9
  %v682 = vsub.f32 %v670, -0.9
  %v683 = vsub.f32 %v675, -0.9
  %v684 = vmul.f32 %v678, %v678
  %v685 = vmul.f32 %v679, %v679
  %v686 = vmul.f32 %v680, %v680
  %v687 = vmul.f32 %v681, %v681
  %v688 = vmul.f32 %v682, %v682
  %v689 = vmul.f32 %v683, %v683
  %v690 = vmul.f32 %v684, -50.0
  %v691 = vmul.f32 %v685, -50.0
  %v692 = vmul.f32 %v686, -50.0
  %v693 = vmul.f32 %v687, -50.0
  %v694 = vmul.f32 %v688, -50.0
  %v695 = vmul.f32 %v689, -50.0
  %v696 = vmul.f32 %v690, 1.442695
  %v697 = vpow.pop %v696
  %v698 = vmul.f32 %v691, 1.442695
  %v699 = vpow.pop %v698
  %v700 = vmul.f32 %v692, 1.442695
  %v701 = vpow.pop %v700
  %v702 = vmul.f32 %v693, 1.442695
  %v703 = vpow.pop %v702
  %v704 = vmul.f32 %v694, 1.442695
  %v705 = vpow.pop %v704
  %v706 = vmul.f32 %v695, 1.442695
  %v707 = vpow.pop %v706
  %v708 = vsub.f32 %v650, -0.7
  %v709 = vsub.f32 %v655, -0.7
  %v710 = vsub.f32 %v660, -0.7
  %v711 = vsub.f32 %v665, -0.7
  %v712 = vsub.f32 %v670, -0.7
  %v713 = vsub.f32 %v675, -0.7
  %v714 = vmul.f32 %v708, %v708
  %v715 = vmul.f32 %v709, %v709
  %v716 = vmul.f32 %v710, %v710
  %v717 = vmul.f32 %v711, %v711
  %v718 = vmul.f32 %v712, %v712
  %v719 = vmul.f32 %v713, %v713
  %v720 = vmul.f32 %v714, -50.0
  %v721 = vmul.f32 %v715, -50.0
  %v722 = vmul.f32 %v716, -50.0
  %v723 = vmul.f32 %v717, -50.0
  %v724 = vmul.f32 %v718, -50.0
  %v725 = vmul.f32 %v719, -50.0
  %v726 = vmul.f32 %v720, 1.442695
  %v727 = vpow.pop %v726
  %v728 = vmul.f32 %v721, 1.442695
  %v729 = vpow.pop %v728
  %v730 = vmul.f32 %v722, 1.442695
  %v731 = vpow.pop %v730
  %v732 = vmul.f32 %v723, 1.442695
  %v733 = vpow.pop %v732
  %v734 = vmul.f32 %v724, 1.442695
  %v735 = vpow.pop %v734
  %v736 = vmul.f32 %v725, 1.442695
  %v737 = vpow.pop %v736
  %v738 = vsub.f32 %v650, -0.5
  %v739 = vsub.f32 %v655, -0.5
  %v740 = vsub.f32 %v660, -0.5
  %v741 = vsub.f32 %v665, -0.5
  %v742 = vsub.f32 %v670, -0.5
  %v743 = vsub.f32 %v675, -0.5
  %v744 = vmul.f32 %v738, %v738
  %v745 = vmul.f32 %v739, %v739
  %v746 = vmul.f32 %v740, %v740
  %v747 = vmul.f32 %v741, %v741
  %v748 = vmul.f32 %v742, %v742
  %v749 = vmul.f32 %v743, %v743
  %v750 = vmul.f32 %v744, -50.0
  %v751 = vmul.f32 %v745, -50.0
  %v752 = vmul.f32 %v746, -50.0
  %v753 = vmul.f32 %v747, -50.0
  %v754 = vmul.f32 %v748, -50.0
  %v755 = vmul.f32 %v749, -50.0
  %v756 = vmul.f32 %v750, 1.442695
  %v757 = vpow.pop %v756
  %v758 = vmul.f32 %v751, 1.442695
  %v759 = vpow.pop %v758
  %v760 = vmul.f32 %v752, 1.442695
  %v761 = vpow.pop %v760
  %v762 = vmul.f32 %v753, 1.442695
  %v763 = vpow.pop %v762
  %v764 = vmul.f32 %v754, 1.442695
  %v765 = vpow.pop %v764
  %v766 = vmul.f32 %v755, 1.442695
  %v767 = vpow.pop %v766
  %v768 = vsub.f32 %v650, -0.3
  %v769 = vsub.f32 %v655, -0.3
  %v770 = vsub.f32 %v660, -0.3
  %v771 = vsub.f32 %v665, -0.3
  %v772 = vsub.f32 %v670, -0.3
  %v773 = vsub.f32 %v675, -0.3
  %v774 = vmul.f32 %v768, %v768
  %v775 = vmul.f32 %v769, %v769
  %v776 = vmul.f32 %v770, %v770
  %v777 = vmul.f32 %v771, %v771
  %v778 = vmul.f32 %v772, %v772
  %v779 = vmul.f32 %v773, %v773
  %v780 = vmul.f32 %v774, -50.0
  %v781 = vmul.f32 %v775, -50.0
  %v782 = vmul.f32 %v776, -50.0
  %v783 = vmul.f32 %v777, -50.0
  %v784 = vmul.f32 %v778, -50.0
  %v785 = vmul.f32 %v779, -50.0
  %v786 = vmul.f32 %v780, 1.442695
  %v787 = vpow.pop %v786
  %v788 = vmul.f32 %v781, 1.442695
  %v789 = vpow.pop %v788
  %v790 = vmul.f32 %v782, 1.442695
  %v791 = vpow.pop %v790
  %v792 = vmul.f32 %v783, 1.442695
  %v793 = vpow.pop %v792
  %v794 = vmul.f32 %v784, 1.442695
  %v795 = vpow.pop %v794
  %v796 = vmul.f32 %v785, 1.442695
  %v797 = vpow.pop %v796
  %v798 = vsub.f32 %v650, -0.1
  %v799 = vsub.f32 %v655, -0.1
  %v800 = vsub.f32 %v660, -0.1
  %v801 = vsub.f32 %v665, -0.1
  %v802 = vsub.f32 %v670, -0.1
  %v803 = vsub.f32 %v675, -0.1
  %v804 = vmul.f32 %v798, %v798
  %v805 = vmul.f32 %v799, %v799
  %v806 = vmul.f32 %v800, %v800
  %v807 = vmul.f32 %v801, %v801
  %v808 = vmul.f32 %v802, %v802
  %v809 = vmul.f32 %v803, %v803
  %v810 = vmul.f32 %v804, -50.0
  %v811 = vmul.f32 %v805, -50.0
  %v812 = vmul.f32 %v806, -50.0
  %v813 = vmul.f32 %v807, -50.0
  %v814 = vmul.f32 %v808, -50.0
  %v815 = vmul.f32 %v809, -50.0
  %v816 = vmul.f32 %v810, 1.442695
  %v817 = vpow.pop %v816
  %v818 = vmul.f32 %v811, 1.442695
  %v819 = vpow.pop %v818
  %v820 = vmul.f32 %v812, 1.442695
  %v821 = vpow.pop %v820
  %v822 = vmul.f32 %v813, 1.442695
  %v823 = vpow.pop %v822
  %v824 = vmul.f32 %v814, 1.442695
  %v825 = vpow.pop %v824
  %v826 = vmul.f32 %v815, 1.442695
  %v827 = vpow.pop %v826
  %v828 = vsub.f32 %v650, 0.1
  %v829 = vsub.f32 %v655, 0.1
  %v830 = vsub.f32 %v660, 0.1
  %v831 = vsub.f32 %v665, 0.1
  %v832 = vsub.f32 %v670, 0.1
  %v833 = vsub.f32 %v675, 0.1
  %v834 = vmul.f32 %v828, %v828
  %v835 = vmul.f32 %v829, %v829
  %v836 = vmul.f32 %v830, %v830
  %v837 = vmul.f32 %v831, %v831
  %v838 = vmul.f32 %v832, %v832
  %v839 = vmul.f32 %v833, %v833
  %v840 = vmul.f32 %v834, -50.0
  %v841 = vmul.f32 %v835, -50.0
  %v842 = vmul.f32 %v836, -50.0
  %v843 = vmul.f32 %v837, -50.0
  %v844 = vmul.f32 %v838, -50.0
  %v845 = vmul.f32 %v839, -50.0
  %v846 = vmul.f32 %v840, 1.442695
  %v847 = vpow.pop %v846
  %v848 = vmul.f32 %v841, 1.442695
  %v849 = vpow.pop %v848
  %v850 = vmul.f32 %v842, 1.442695
  %v851 = vpow.pop %v850
  %v852 = vmul.f32 %v843, 1.442695
  %v853 = vpow.pop %v852
  %v854 = vmul.f32 %v844, 1.442695
  %v855 = vpow.pop %v854
  %v856 = vmul.f32 %v845, 1.442695
  %v857 = vpow.pop %v856
  %v858 = vsub.f32 %v650, 0.3
  %v859 = vsub.f32 %v655, 0.3
  %v860 = vsub.f32 %v660, 0.3
  %v861 = vsub.f32 %v665, 0.3
  %v862 = vsub.f32 %v670, 0.3
  %v863 = vsub.f32 %v675, 0.3
  %v864 = vmul.f32 %v858, %v858
  %v865 = vmul.f32 %v859, %v859
  %v866 = vmul.f32 %v860, %v860
  %v867 = vmul.f32 %v861, %v861
  %v868 = vmul.f32 %v862, %v862
  %v869 = vmul.f32 %v863, %v863
  %v870 = vmul.f32 %v864, -50.0
  %v871 = vmul.f32 %v865, -50.0
  %v872 = vmul.f32 %v866, -50.0
  %v873 = vmul.f32 %v867, -50.0
  %v874 = vmul.f32 %v868, -50.0
  %v875 = vmul.f32 %v869, -50.0
  %v876 = vmul.f32 %v870, 1.442695
  %v877 = vpow.pop %v876
  %v878 = vmul.f32 %v871, 1.442695
  %v879 = vpow.pop %v878
  %v880 = vmul.f32 %v872, 1.442695
  %v881 = vpow.pop %v880
  %v882 = vmul.f32 %v873, 1.442695
  %v883 = vpow.pop %v882
  %v884 = vmul.f32 %v874, 1.442695
  %v885 = vpow.pop %v884
  %v886 = vmul.f32 %v875, 1.442695
  %v887 = vpow.pop %v886
  %v888 = vsub.f32 %v650, 0.5
  %v889 = vsub.f32 %v655, 0.5
  %v890 = vsub.f32 %v660, 0.5
  %v891 = vsub.f32 %v665, 0.5
  %v892 = vsub.f32 %v670, 0.5
  %v893 = vsub.f32 %v675, 0.5
  %v894 = vmul.f32 %v888, %v888
  %v895 = vmul.f32 %v889, %v889
  %v896 = vmul.f32 %v890, %v890
  %v897 = vmul.f32 %v891, %v891
  %v898 = vmul.f32 %v892, %v892
  %v899 = vmul.f32 %v893, %v893
  %v900 = vmul.f32 %v894, -50.0
  %v901 = vmul.f32 %v895, -50.0
  %v902 = vmul.f32 %v896, -50.0
  %v903 = vmul.f32 %v897, -50.0
  %v904 = vmul.f32 %v898, -50.0
  %v905 = vmul.f32 %v899, -50.0
  %v906 = vmul.f32 %v900, 1.442695
  %v907 = vpow.pop %v906
  %v908 = vmul.f32 %v901, 1.442695
  %v909 = vpow.pop %v908
  %v910 = vmul.f32 %v902, 1.442695
  %v911 = vpow.pop %v910
  %v912 = vmul.f32 %v903, 1.442695
  %v913 = vpow.pop %v912
  %v914 = vmul.f32 %v904, 1.442695
  %v915 = vpow.pop %v914
  %v916 = vmul.f32 %v905, 1.442695
  %v917 = vpow.pop %v916
  %v918 = vsub.f32 %v650, 0.7
  %v919 = vsub.f32 %v655, 0.7
  %v920 = vsub.f32 %v660, 0.7
  %v921 = vsub.f32 %v665, 0.7
  %v922 = vsub.f32 %v670, 0.7
  %v923 = vsub.f32 %v675, 0.7
  %v924 = vmul.f32 %v918, %v918
  %v925 = vmul.f32 %v919, %v919
  %v926 = vmul.f32 %v920, %v920
  %v927 = vmul.f32 %v921, %v921
  %v928 = vmul.f32 %v922, %v922
  %v929 = vmul.f32 %v923, %v923
  %v930 = vmul.f32 %v924, -50.0
  %v931 = vmul.f32 %v925, -50.0
  %v932 = vmul.f32 %v926, -50.0
  %v933 = vmul.f32 %v927, -50.0
  %v934 = vmul.f32 %v928, -50.0
  %v935 = vmul.f32 %v929, -50.0
  %v936 = vmul.f32 %v930, 1.442695
  %v937 = vpow.pop %v936
  %v938 = vmul.f32 %v931, 1.442695
  %v939 = vpow.pop %v938
  %v940 = vmul.f32 %v932, 1.442695
  %v941 = vpow.pop %v940
  %v942 = vmul.f32 %v933, 1.442695
  %v943 = vpow.pop %v942
  %v944 = vmul.f32 %v934, 1.442695
  %v945 = vpow.pop %v944
  %v946 = vmul.f32 %v935, 1.442695
  %v947 = vpow.pop %v946
  %v948 = vsub.f32 %v650, 0.9
  %v949 = vsub.f32 %v655, 0.9
  %v950 = vsub.f32 %v660, 0.9
  %v951 = vsub.f32 %v665, 0.9
  %v952 = vsub.f32 %v670, 0.9
  %v953 = vsub.f32 %v675, 0.9
  %v954 = vmul.f32 %v948, %v948
  %v955 = vmul.f32 %v949, %v949
  %v956 = vmul.f32 %v950, %v950
  %v957 = vmul.f32 %v951, %v951
  %v958 = vmul.f32 %v952, %v952
  %v959 = vmul.f32 %v953, %v953
  %v960 = vmul.f32 %v954, -50.0
  %v961 = vmul.f32 %v955, -50.0
  %v962 = vmul.f32 %v956, -50.0
  %v963 = vmul.f32 %v957, -50.0
  %v964 = vmul.f32 %v958, -50.0
  %v965 = vmul.f32 %v959, -50.0
  %v966 = vmul.f32 %v960, 1.442695
  %v967 = vpow.pop %v966
  %v968 = vmul.f32 %v961, 1.442695
  %v969 = vpow.pop %v968
  %v970 = vmul.f32 %v962, 1.442695
  %v971 = vpow.pop %v970
  %v972 = vmul.f32 %v963, 1.442695
  %v973 = vpow.pop %v972
  %v974 = vmul.f32 %v964, 1.442695
  %v975 = vpow.pop %v974
  %v976 = vmul.f32 %v965, 1.442695
  %v977 = vpow.pop %v976
  %v978 = vsub.f32 %v650, 1.0
  %v979 = vsub.f32 %v655, 1.0
  %v980 = vsub.f32 %v660, 1.0
  %v981 = vsub.f32 %v665, 1.0
  %v982 = vsub.f32 %v670, 1.0
  %v983 = vsub.f32 %v675, 1.0
  %v984 = vmul.f32 %v978, %v978
  %v985 = vmul.f32 %v979, %v979
  %v986 = vmul.f32 %v980, %v980
  %v987 = vmul.f32 %v981, %v981
  %v988 = vmul.f32 %v982, %v982
  %v989 = vmul.f32 %v983, %v983
  %v990 = vmul.f32 %v984, -500000.0
  %v991 = vmul.f32 %v985, -500000.0
  %v992 = vmul.f32 %v986, -500000.0
  %v993 = vmul.f32 %v987, -500000.0
  %v994 = vmul.f32 %v988, -500000.0
  %v995 = vmul.f32 %v989, -500000.0
  %v996 = vmul.f32 %v990, 1.442695
  %v997 = vpow.pop %v996
  %v998 = vmul.f32 %v991, 1.442695
  %v999 = vpow.pop %v998
  %v1000 = vmul.f32 %v992, 1.442695
  %v1001 = vpow.pop %v1000
  %v1002 = vmul.f32 %v993, 1.442695
  %v1003 = vpow.pop %v1002
  %v1004 = vmul.f32 %v994, 1.442695
  %v1005 = vpow.pop %v1004
  %v1006 = vmul.f32 %v995, 1.442695
  %v1007 = vpow.pop %v1006
  %v1008 = vld [vmem:[%s3] sm:$0xff]
  %v1009 = vld [vmem:[%s3 + $0x8] sm:$0xff]
  %v1010 = vld [vmem:[%s3 + $0x10] sm:$0xff]
  %v1011 = vld [vmem:[%s3 + $0x18] sm:$0xff]
  %v1012 = vld [vmem:[%s3 + $0x20] sm:$0xff]
  %v1013 = vld [vmem:[%s3 + $0x28] sm:$0xff]
  %v1014 = vld [vmem:[%s3 + $0x30] sm:$0xff]
  %v1015 = vld [vmem:[%s3 + $0x38] sm:$0xff]
  %v1016 = vld [vmem:[%s3 + $0x40] sm:$0xff]
  %v1017 = vld [vmem:[%s3 + $0x48] sm:$0xff]
  %v1018 = vld [vmem:[%s3 + $0x50] sm:$0xff]
  %v1019 = vld [vmem:[%s3 + $0x58] sm:$0xff]
  %vm1020 = vcmask 785408
  %v1022 = vsel %vm1020, %v697, 0
  %v1025 = vsel %vm1020, %v699, 0
  %v1028 = vsel %vm1020, %v701, 0
  %v1031 = vsel %vm1020, %v703, 0
  %v1034 = vsel %vm1020, %v705, 0
  %v1037 = vsel %vm1020, %v707, 0
  %v1040 = vsel %vm1020, %v727, 0
  %v1043 = vsel %vm1020, %v729, 0
  %v1046 = vsel %vm1020, %v731, 0
  %v1049 = vsel %vm1020, %v733, 0
  %v1052 = vsel %vm1020, %v735, 0
  %v1055 = vsel %vm1020, %v737, 0
  %v1058 = vsel %vm1020, %v757, 0
  %v1061 = vsel %vm1020, %v759, 0
  %v1064 = vsel %vm1020, %v761, 0
  %v1067 = vsel %vm1020, %v763, 0
  %v1070 = vsel %vm1020, %v765, 0
  %v1073 = vsel %vm1020, %v767, 0
  %v1076 = vsel %vm1020, %v787, 0
  %v1079 = vsel %vm1020, %v789, 0
  %v1082 = vsel %vm1020, %v791, 0
  %v1085 = vsel %vm1020, %v793, 0
  %v1088 = vsel %vm1020, %v795, 0
  %v1091 = vsel %vm1020, %v797, 0
  %v1094 = vsel %vm1020, %v817, 0
  %v1097 = vsel %vm1020, %v819, 0
  %v1100 = vsel %vm1020, %v821, 0
  %v1103 = vsel %vm1020, %v823, 0
  %v1106 = vsel %vm1020, %v825, 0
  %v1109 = vsel %vm1020, %v827, 0
  %v1112 = vsel %vm1020, %v847, 0
  %v1115 = vsel %vm1020, %v849, 0
  %v1118 = vsel %vm1020, %v851, 0
  %v1121 = vsel %vm1020, %v853, 0
  %v1124 = vsel %vm1020, %v855, 0
  %v1127 = vsel %vm1020, %v857, 0
  %v1130 = vsel %vm1020, %v877, 0
  %v1133 = vsel %vm1020, %v879, 0
  %v1136 = vsel %vm1020, %v881, 0
  %v1139 = vsel %vm1020, %v883, 0
  %v1142 = vsel %vm1020, %v885, 0
  %v1145 = vsel %vm1020, %v887, 0
  %v1148 = vsel %vm1020, %v907, 0
  %v1151 = vsel %vm1020, %v909, 0
  %v1154 = vsel %vm1020, %v911, 0
  %v1157 = vsel %vm1020, %v913, 0
  %v1160 = vsel %vm1020, %v915, 0
  %v1163 = vsel %vm1020, %v917, 0
  %v1166 = vsel %vm1020, %v937, 0
  %v1169 = vsel %vm1020, %v939, 0
  %v1172 = vsel %vm1020, %v941, 0
  %v1175 = vsel %vm1020, %v943, 0
  %v1178 = vsel %vm1020, %v945, 0
  %v1181 = vsel %vm1020, %v947, 0
  %v1184 = vsel %vm1020, %v967, 0
  %v1187 = vsel %vm1020, %v969, 0
  %v1190 = vsel %vm1020, %v971, 0
  %v1193 = vsel %vm1020, %v973, 0
  %v1196 = vsel %vm1020, %v975, 0
  %v1199 = vsel %vm1020, %v977, 0
  %v1202 = vsel %vm1020, %v997, 0
  %v1205 = vsel %vm1020, %v999, 0
  %v1208 = vsel %vm1020, %v1001, 0
  %v1211 = vsel %vm1020, %v1003, 0
  %v1214 = vsel %vm1020, %v1005, 0
  %v1217 = vsel %vm1020, %v1007, 0
  %1219 = vmatprep.subr.mxu0 0.0
  %1220 = vmatpush1.msra.mxu0 0.0
  %1221 = vmatprep.subr.mxu0 0.0
  %1222 = vmatpush1.msra.mxu0 0.0
  %1223 = vmatprep.subr.mxu0 0.0
  %1224 = vmatpush1.msra.mxu0 0.0
  %1225 = vmatprep.subr.mxu0 0.0
  %1226 = vmatpush1.msra.mxu0 0.0
  %1227 = vmatprep.subr.mxu0 0.0
  %1228 = vmatpush1.msra.mxu0 %v1019
  %1229 = vmatprep.subr.mxu0 0.0
  %1230 = vmatpush1.msra.mxu0 %v1018
  %1231 = vmatprep.subr.mxu0 0.0
  %1232 = vmatpush1.msra.mxu0 %v1017
  %1233 = vmatprep.subr.mxu0 0.0
  %1234 = vmatpush1.msra.mxu0 %v1016
  %1235 = vmatprep.subr.mxu0 0.0
  %1236 = vmatpush1.msra.mxu0 %v1015
  %1237 = vmatprep.subr.mxu0 0.0
  %1238 = vmatpush1.msra.mxu0 %v1014
  %1239 = vmatprep.subr.mxu0 0.0
  %1240 = vmatpush1.msra.mxu0 %v1013
  %1241 = vmatprep.subr.mxu0 0.0
  %1242 = vmatpush1.msra.mxu0 %v1012
  %1243 = vmatprep.subr.mxu0 0.0
  %1244 = vmatpush1.msra.mxu0 %v1011
  %1245 = vmatprep.subr.mxu0 0.0
  %1246 = vmatpush1.msra.mxu0 %v1010
  %1247 = vmatprep.subr.mxu0 0.0
  %1248 = vmatpush1.msra.mxu0 %v1009
  %1249 = vmatprep.subr.mxu0 0.0
  %1250 = vmatpush1.msra.mxu0 %v1008
  %1251 = vmatprep.subr.mxu0 0.0
  %1252 = vmatpush2.msra.mxu0 0.0
  %1253 = vmatprep.subr.mxu0 0.0
  %1254 = vmatpush2.msra.mxu0 0.0
  %1255 = vmatprep.subr.mxu0 0.0
  %1256 = vmatpush2.msra.mxu0 0.0
  %1257 = vmatprep.subr.mxu0 0.0
  %1258 = vmatpush2.msra.mxu0 0.0
  %1259 = vmatprep.subr.mxu0 0.0
  %1260 = vmatpush2.msra.mxu0 0.0
  %1261 = vmatprep.subr.mxu0 0.0
  %1262 = vmatpush2.msra.mxu0 0.0
  %1263 = vmatprep.subr.mxu0 0.0
  %1264 = vmatpush2.msra.mxu0 0.0
  %1265 = vmatprep.subr.mxu0 0.0
  %1266 = vmatpush2.msra.mxu0 0.0
  %1267 = vmatprep.subr.mxu0 0.0
  %1268 = vmatpush2.msra.mxu0 0.0
  %1269 = vmatprep.subr.mxu0 0.0
  %1270 = vmatpush2.msra.mxu0 0.0
  %1271 = vmatprep.subr.mxu0 0.0
  %1272 = vmatpush2.msra.mxu0 0.0
  %1273 = vmatprep.subr.mxu0 0.0
  %1274 = vmatpush2.msra.mxu0 0.0
  %1275 = vmatprep.subr.mxu0 0.0
  %1276 = vmatpush2.msra.mxu0 0.0
  %1277 = vmatprep.subr.mxu0 0.0
  %1278 = vmatpush2.msra.mxu0 0.0
  %1279 = vmatprep.subr.mxu0 0.0
  %1280 = vmatpush2.msra.mxu0 0.0
  %1281 = vmatprep.subr.mxu0 0.0
  %1282 = vmatpush2.msra.mxu0 0.0
  %1283 = vmatprep.mubr.f32.mxu0 0.0
  %1284 = vmatmul.mubr.f32.gmra.mxu0 %v1022
  %v1285 = vpop.f32.mrf.mxu0
  %v1286 = vadd.f32 0.0, %v1285
  %v1287 = vpop.f32.mrf.mxu0
  %1288 = vmatprep.mubr.f32.mxu0 0.0
  %1289 = vmatmul.mubr.f32.gmra.mxu0 %v1025
  %v1290 = vpop.f32.mrf.mxu0
  %v1291 = vadd.f32 0.0, %v1290
  %v1292 = vpop.f32.mrf.mxu0
  %1293 = vmatprep.mubr.f32.mxu0 0.0
  %1294 = vmatmul.mubr.f32.gmra.mxu0 %v1028
  %v1295 = vpop.f32.mrf.mxu0
  %v1296 = vadd.f32 0.0, %v1295
  %v1297 = vpop.f32.mrf.mxu0
  %1298 = vmatprep.mubr.f32.mxu0 0.0
  %1299 = vmatmul.mubr.f32.gmra.mxu0 %v1031
  %v1300 = vpop.f32.mrf.mxu0
  %v1301 = vadd.f32 0.0, %v1300
  %v1302 = vpop.f32.mrf.mxu0
  %1303 = vmatprep.mubr.f32.mxu0 0.0
  %1304 = vmatmul.mubr.f32.gmra.mxu0 %v1034
  %v1305 = vpop.f32.mrf.mxu0
  %v1306 = vadd.f32 0.0, %v1305
  %v1307 = vpop.f32.mrf.mxu0
  %1308 = vmatprep.mubr.f32.mxu0 0.0
  %1309 = vmatmul.mubr.f32.gmra.mxu0 %v1037
  %v1310 = vpop.f32.mrf.mxu0
  %v1311 = vadd.f32 0.0, %v1310
  %v1312 = vpop.f32.mrf.mxu0
  %1313 = vmatprep.mubr.f32.mxu0 0.0
  %1314 = vmatmul.mubr.f32.gmra.mxu0 %v1040
  %v1315 = vpop.f32.mrf.mxu0
  %v1316 = vadd.f32 0.0, %v1315
  %v1317 = vpop.f32.mrf.mxu0
  %1318 = vmatprep.mubr.f32.mxu0 0.0
  %1319 = vmatmul.mubr.f32.gmra.mxu0 %v1043
  %v1320 = vpop.f32.mrf.mxu0
  %v1321 = vadd.f32 0.0, %v1320
  %v1322 = vpop.f32.mrf.mxu0
  %1323 = vmatprep.mubr.f32.mxu0 0.0
  %1324 = vmatmul.mubr.f32.gmra.mxu0 %v1046
  %v1325 = vpop.f32.mrf.mxu0
  %v1326 = vadd.f32 0.0, %v1325
  %v1327 = vpop.f32.mrf.mxu0
  %1328 = vmatprep.mubr.f32.mxu0 0.0
  %1329 = vmatmul.mubr.f32.gmra.mxu0 %v1049
  %v1330 = vpop.f32.mrf.mxu0
  %v1331 = vadd.f32 0.0, %v1330
  %v1332 = vpop.f32.mrf.mxu0
  %1333 = vmatprep.mubr.f32.mxu0 0.0
  %1334 = vmatmul.mubr.f32.gmra.mxu0 %v1052
  %v1335 = vpop.f32.mrf.mxu0
  %v1336 = vadd.f32 0.0, %v1335
  %v1337 = vpop.f32.mrf.mxu0
  %1338 = vmatprep.mubr.f32.mxu0 0.0
  %1339 = vmatmul.mubr.f32.gmra.mxu0 %v1055
  %v1340 = vpop.f32.mrf.mxu0
  %v1341 = vadd.f32 0.0, %v1340
  %v1342 = vpop.f32.mrf.mxu0
  %1343 = vmatprep.mubr.f32.mxu0 0.0
  %1344 = vmatmul.mubr.f32.gmra.mxu0 %v1058
  %v1345 = vpop.f32.mrf.mxu0
  %v1346 = vadd.f32 0.0, %v1345
  %v1347 = vpop.f32.mrf.mxu0
  %1348 = vmatprep.mubr.f32.mxu0 0.0
  %1349 = vmatmul.mubr.f32.gmra.mxu0 %v1061
  %v1350 = vpop.f32.mrf.mxu0
  %v1351 = vadd.f32 0.0, %v1350
  %v1352 = vpop.f32.mrf.mxu0
  %1353 = vmatprep.mubr.f32.mxu0 0.0
  %1354 = vmatmul.mubr.f32.gmra.mxu0 %v1064
  %v1355 = vpop.f32.mrf.mxu0
  %v1356 = vadd.f32 0.0, %v1355
  %v1357 = vpop.f32.mrf.mxu0
  %1358 = vmatprep.mubr.f32.mxu0 0.0
  %1359 = vmatmul.mubr.f32.gmra.mxu0 %v1067
  %v1360 = vpop.f32.mrf.mxu0
  %v1361 = vadd.f32 0.0, %v1360
  %v1362 = vpop.f32.mrf.mxu0
  %1363 = vmatprep.mubr.f32.mxu0 0.0
  %1364 = vmatmul.mubr.f32.gmra.mxu0 %v1070
  %v1365 = vpop.f32.mrf.mxu0
  %v1366 = vadd.f32 0.0, %v1365
  %v1367 = vpop.f32.mrf.mxu0
  %1368 = vmatprep.mubr.f32.mxu0 0.0
  %1369 = vmatmul.mubr.f32.gmra.mxu0 %v1073
  %v1370 = vpop.f32.mrf.mxu0
  %v1371 = vadd.f32 0.0, %v1370
  %v1372 = vpop.f32.mrf.mxu0
  %1373 = vmatprep.mubr.f32.mxu0 0.0
  %1374 = vmatmul.mubr.f32.gmra.mxu0 %v1076
  %v1375 = vpop.f32.mrf.mxu0
  %v1376 = vadd.f32 0.0, %v1375
  %v1377 = vpop.f32.mrf.mxu0
  %1378 = vmatprep.mubr.f32.mxu0 0.0
  %1379 = vmatmul.mubr.f32.gmra.mxu0 %v1079
  %v1380 = vpop.f32.mrf.mxu0
  %v1381 = vadd.f32 0.0, %v1380
  %v1382 = vpop.f32.mrf.mxu0
  %1383 = vmatprep.mubr.f32.mxu0 0.0
  %1384 = vmatmul.mubr.f32.gmra.mxu0 %v1082
  %v1385 = vpop.f32.mrf.mxu0
  %v1386 = vadd.f32 0.0, %v1385
  %v1387 = vpop.f32.mrf.mxu0
  %1388 = vmatprep.mubr.f32.mxu0 0.0
  %1389 = vmatmul.mubr.f32.gmra.mxu0 %v1085
  %v1390 = vpop.f32.mrf.mxu0
  %v1391 = vadd.f32 0.0, %v1390
  %v1392 = vpop.f32.mrf.mxu0
  %1393 = vmatprep.mubr.f32.mxu0 0.0
  %1394 = vmatmul.mubr.f32.gmra.mxu0 %v1088
  %v1395 = vpop.f32.mrf.mxu0
  %v1396 = vadd.f32 0.0, %v1395
  %v1397 = vpop.f32.mrf.mxu0
  %1398 = vmatprep.mubr.f32.mxu0 0.0
  %1399 = vmatmul.mubr.f32.gmra.mxu0 %v1091
  %v1400 = vpop.f32.mrf.mxu0
  %v1401 = vadd.f32 0.0, %v1400
  %v1402 = vpop.f32.mrf.mxu0
  %1403 = vmatprep.mubr.f32.mxu0 0.0
  %1404 = vmatmul.mubr.f32.gmra.mxu0 %v1094
  %v1405 = vpop.f32.mrf.mxu0
  %v1406 = vadd.f32 0.0, %v1405
  %v1407 = vpop.f32.mrf.mxu0
  %1408 = vmatprep.mubr.f32.mxu0 0.0
  %1409 = vmatmul.mubr.f32.gmra.mxu0 %v1097
  %v1410 = vpop.f32.mrf.mxu0
  %v1411 = vadd.f32 0.0, %v1410
  %v1412 = vpop.f32.mrf.mxu0
  %1413 = vmatprep.mubr.f32.mxu0 0.0
  %1414 = vmatmul.mubr.f32.gmra.mxu0 %v1100
  %v1415 = vpop.f32.mrf.mxu0
  %v1416 = vadd.f32 0.0, %v1415
  %v1417 = vpop.f32.mrf.mxu0
  %1418 = vmatprep.mubr.f32.mxu0 0.0
  %1419 = vmatmul.mubr.f32.gmra.mxu0 %v1103
  %v1420 = vpop.f32.mrf.mxu0
  %v1421 = vadd.f32 0.0, %v1420
  %v1422 = vpop.f32.mrf.mxu0
  %1423 = vmatprep.mubr.f32.mxu0 0.0
  %1424 = vmatmul.mubr.f32.gmra.mxu0 %v1106
  %v1425 = vpop.f32.mrf.mxu0
  %v1426 = vadd.f32 0.0, %v1425
  %v1427 = vpop.f32.mrf.mxu0
  %1428 = vmatprep.mubr.f32.mxu0 0.0
  %1429 = vmatmul.mubr.f32.gmra.mxu0 %v1109
  %v1430 = vpop.f32.mrf.mxu0
  %v1431 = vadd.f32 0.0, %v1430
  %v1432 = vpop.f32.mrf.mxu0
  %1433 = vmatprep.mubr.f32.mxu0 0.0
  %1434 = vmatmul.mubr.f32.gmra.mxu0 %v1112
  %v1435 = vpop.f32.mrf.mxu0
  %v1436 = vadd.f32 0.0, %v1435
  %v1437 = vpop.f32.mrf.mxu0
  %1438 = vmatprep.mubr.f32.mxu0 0.0
  %1439 = vmatmul.mubr.f32.gmra.mxu0 %v1115
  %v1440 = vpop.f32.mrf.mxu0
  %v1441 = vadd.f32 0.0, %v1440
  %v1442 = vpop.f32.mrf.mxu0
  %1443 = vmatprep.mubr.f32.mxu0 0.0
  %1444 = vmatmul.mubr.f32.gmra.mxu0 %v1118
  %v1445 = vpop.f32.mrf.mxu0
  %v1446 = vadd.f32 0.0, %v1445
  %v1447 = vpop.f32.mrf.mxu0
  %1448 = vmatprep.mubr.f32.mxu0 0.0
  %1449 = vmatmul.mubr.f32.gmra.mxu0 %v1121
  %v1450 = vpop.f32.mrf.mxu0
  %v1451 = vadd.f32 0.0, %v1450
  %v1452 = vpop.f32.mrf.mxu0
  %1453 = vmatprep.mubr.f32.mxu0 0.0
  %1454 = vmatmul.mubr.f32.gmra.mxu0 %v1124
  %v1455 = vpop.f32.mrf.mxu0
  %v1456 = vadd.f32 0.0, %v1455
  %v1457 = vpop.f32.mrf.mxu0
  %1458 = vmatprep.mubr.f32.mxu0 0.0
  %1459 = vmatmul.mubr.f32.gmra.mxu0 %v1127
  %v1460 = vpop.f32.mrf.mxu0
  %v1461 = vadd.f32 0.0, %v1460
  %v1462 = vpop.f32.mrf.mxu0
  %1463 = vmatprep.mubr.f32.mxu0 0.0
  %1464 = vmatmul.mubr.f32.gmra.mxu0 %v1130
  %v1465 = vpop.f32.mrf.mxu0
  %v1466 = vadd.f32 0.0, %v1465
  %v1467 = vpop.f32.mrf.mxu0
  %1468 = vmatprep.mubr.f32.mxu0 0.0
  %1469 = vmatmul.mubr.f32.gmra.mxu0 %v1133
  %v1470 = vpop.f32.mrf.mxu0
  %v1471 = vadd.f32 0.0, %v1470
  %v1472 = vpop.f32.mrf.mxu0
  %1473 = vmatprep.mubr.f32.mxu0 0.0
  %1474 = vmatmul.mubr.f32.gmra.mxu0 %v1136
  %v1475 = vpop.f32.mrf.mxu0
  %v1476 = vadd.f32 0.0, %v1475
  %v1477 = vpop.f32.mrf.mxu0
  %1478 = vmatprep.mubr.f32.mxu0 0.0
  %1479 = vmatmul.mubr.f32.gmra.mxu0 %v1139
  %v1480 = vpop.f32.mrf.mxu0
  %v1481 = vadd.f32 0.0, %v1480
  %v1482 = vpop.f32.mrf.mxu0
  %1483 = vmatprep.mubr.f32.mxu0 0.0
  %1484 = vmatmul.mubr.f32.gmra.mxu0 %v1142
  %v1485 = vpop.f32.mrf.mxu0
  %v1486 = vadd.f32 0.0, %v1485
  %v1487 = vpop.f32.mrf.mxu0
  %1488 = vmatprep.mubr.f32.mxu0 0.0
  %1489 = vmatmul.mubr.f32.gmra.mxu0 %v1145
  %v1490 = vpop.f32.mrf.mxu0
  %v1491 = vadd.f32 0.0, %v1490
  %v1492 = vpop.f32.mrf.mxu0
  %1493 = vmatprep.mubr.f32.mxu0 0.0
  %1494 = vmatmul.mubr.f32.gmra.mxu0 %v1148
  %v1495 = vpop.f32.mrf.mxu0
  %v1496 = vadd.f32 0.0, %v1495
  %v1497 = vpop.f32.mrf.mxu0
  %1498 = vmatprep.mubr.f32.mxu0 0.0
  %1499 = vmatmul.mubr.f32.gmra.mxu0 %v1151
  %v1500 = vpop.f32.mrf.mxu0
  %v1501 = vadd.f32 0.0, %v1500
  %v1502 = vpop.f32.mrf.mxu0
  %1503 = vmatprep.mubr.f32.mxu0 0.0
  %1504 = vmatmul.mubr.f32.gmra.mxu0 %v1154
  %v1505 = vpop.f32.mrf.mxu0
  %v1506 = vadd.f32 0.0, %v1505
  %v1507 = vpop.f32.mrf.mxu0
  %1508 = vmatprep.mubr.f32.mxu0 0.0
  %1509 = vmatmul.mubr.f32.gmra.mxu0 %v1157
  %v1510 = vpop.f32.mrf.mxu0
  %v1511 = vadd.f32 0.0, %v1510
  %v1512 = vpop.f32.mrf.mxu0
  %1513 = vmatprep.mubr.f32.mxu0 0.0
  %1514 = vmatmul.mubr.f32.gmra.mxu0 %v1160
  %v1515 = vpop.f32.mrf.mxu0
  %v1516 = vadd.f32 0.0, %v1515
  %v1517 = vpop.f32.mrf.mxu0
  %1518 = vmatprep.mubr.f32.mxu0 0.0
  %1519 = vmatmul.mubr.f32.gmra.mxu0 %v1163
  %v1520 = vpop.f32.mrf.mxu0
  %v1521 = vadd.f32 0.0, %v1520
  %v1522 = vpop.f32.mrf.mxu0
  %1523 = vmatprep.mubr.f32.mxu0 0.0
  %1524 = vmatmul.mubr.f32.gmra.mxu0 %v1166
  %v1525 = vpop.f32.mrf.mxu0
  %v1526 = vadd.f32 0.0, %v1525
  %v1527 = vpop.f32.mrf.mxu0
  %1528 = vmatprep.mubr.f32.mxu0 0.0
  %1529 = vmatmul.mubr.f32.gmra.mxu0 %v1169
  %v1530 = vpop.f32.mrf.mxu0
  %v1531 = vadd.f32 0.0, %v1530
  %v1532 = vpop.f32.mrf.mxu0
  %1533 = vmatprep.mubr.f32.mxu0 0.0
  %1534 = vmatmul.mubr.f32.gmra.mxu0 %v1172
  %v1535 = vpop.f32.mrf.mxu0
  %v1536 = vadd.f32 0.0, %v1535
  %v1537 = vpop.f32.mrf.mxu0
  %1538 = vmatprep.mubr.f32.mxu0 0.0
  %1539 = vmatmul.mubr.f32.gmra.mxu0 %v1175
  %v1540 = vpop.f32.mrf.mxu0
  %v1541 = vadd.f32 0.0, %v1540
  %v1542 = vpop.f32.mrf.mxu0
  %1543 = vmatprep.mubr.f32.mxu0 0.0
  %1544 = vmatmul.mubr.f32.gmra.mxu0 %v1178
  %v1545 = vpop.f32.mrf.mxu0
  %v1546 = vadd.f32 0.0, %v1545
  %v1547 = vpop.f32.mrf.mxu0
  %1548 = vmatprep.mubr.f32.mxu0 0.0
  %1549 = vmatmul.mubr.f32.gmra.mxu0 %v1181
  %v1550 = vpop.f32.mrf.mxu0
  %v1551 = vadd.f32 0.0, %v1550
  %v1552 = vpop.f32.mrf.mxu0
  %1553 = vmatprep.mubr.f32.mxu0 0.0
  %1554 = vmatmul.mubr.f32.gmra.mxu0 %v1184
  %v1555 = vpop.f32.mrf.mxu0
  %v1556 = vadd.f32 0.0, %v1555
  %v1557 = vpop.f32.mrf.mxu0
  %1558 = vmatprep.mubr.f32.mxu0 0.0
  %1559 = vmatmul.mubr.f32.gmra.mxu0 %v1187
  %v1560 = vpop.f32.mrf.mxu0
  %v1561 = vadd.f32 0.0, %v1560
  %v1562 = vpop.f32.mrf.mxu0
  %1563 = vmatprep.mubr.f32.mxu0 0.0
  %1564 = vmatmul.mubr.f32.gmra.mxu0 %v1190
  %v1565 = vpop.f32.mrf.mxu0
  %v1566 = vadd.f32 0.0, %v1565
  %v1567 = vpop.f32.mrf.mxu0
  %1568 = vmatprep.mubr.f32.mxu0 0.0
  %1569 = vmatmul.mubr.f32.gmra.mxu0 %v1193
  %v1570 = vpop.f32.mrf.mxu0
  %v1571 = vadd.f32 0.0, %v1570
  %v1572 = vpop.f32.mrf.mxu0
  %1573 = vmatprep.mubr.f32.mxu0 0.0
  %1574 = vmatmul.mubr.f32.gmra.mxu0 %v1196
  %v1575 = vpop.f32.mrf.mxu0
  %v1576 = vadd.f32 0.0, %v1575
  %v1577 = vpop.f32.mrf.mxu0
  %1578 = vmatprep.mubr.f32.mxu0 0.0
  %1579 = vmatmul.mubr.f32.gmra.mxu0 %v1199
  %v1580 = vpop.f32.mrf.mxu0
  %v1581 = vadd.f32 0.0, %v1580
  %v1582 = vpop.f32.mrf.mxu0
  %1583 = vmatprep.mubr.f32.mxu0 0.0
  %1584 = vmatmul.mubr.f32.gmra.mxu0 %v1202
  %v1585 = vpop.f32.mrf.mxu0
  %v1586 = vadd.f32 0.0, %v1585
  %v1587 = vpop.f32.mrf.mxu0
  %1588 = vmatprep.mubr.f32.mxu0 0.0
  %1589 = vmatmul.mubr.f32.gmra.mxu0 %v1205
  %v1590 = vpop.f32.mrf.mxu0
  %v1591 = vadd.f32 0.0, %v1590
  %v1592 = vpop.f32.mrf.mxu0
  %1593 = vmatprep.mubr.f32.mxu0 0.0
  %1594 = vmatmul.mubr.f32.gmra.mxu0 %v1208
  %v1595 = vpop.f32.mrf.mxu0
  %v1596 = vadd.f32 0.0, %v1595
  %v1597 = vpop.f32.mrf.mxu0
  %1598 = vmatprep.mubr.f32.mxu0 0.0
  %1599 = vmatmul.mubr.f32.gmra.mxu0 %v1211
  %v1600 = vpop.f32.mrf.mxu0
  %v1601 = vadd.f32 0.0, %v1600
  %v1602 = vpop.f32.mrf.mxu0
  %1603 = vmatprep.mubr.f32.mxu0 0.0
  %1604 = vmatmul.mubr.f32.gmra.mxu0 %v1214
  %v1605 = vpop.f32.mrf.mxu0
  %v1606 = vadd.f32 0.0, %v1605
  %v1607 = vpop.f32.mrf.mxu0
  %1608 = vmatprep.mubr.f32.mxu0 0.0
  %1609 = vmatmul.mubr.f32.gmra.mxu0 %v1217
  %v1610 = vpop.f32.mrf.mxu0
  %v1611 = vadd.f32 0.0, %v1610
  %v1612 = vpop.f32.mrf.mxu0
  %1613 = vdwg.mxu0
  %v1614 = vadd.f32 %v1286, 1.0
  %v1615 = vlog2.pop %v1614
  %v1616 = vmul.f32 %v1615, 0.6931472
  %v1617 = vmul.f32 -0.5, %v1286
  %v1618 = vadd.f32 %v1617, 1.0
  %v1619 = vmul.f32 %v1618, %v1286
  %v1620 = vand.u32 2147483647, %v1286
  %vm1621 = vcmp.lt.f32.partialorder %v1620, 0.0004427343
  %v1622 = vsel %vm1621, %v1619, %v1616
  %v1623 = vadd.f32 %v1291, 1.0
  %v1624 = vlog2.pop %v1623
  %v1625 = vmul.f32 %v1624, 0.6931472
  %v1626 = vmul.f32 -0.5, %v1291
  %v1627 = vadd.f32 %v1626, 1.0
  %v1628 = vmul.f32 %v1627, %v1291
  %v1629 = vand.u32 2147483647, %v1291
  %vm1630 = vcmp.lt.f32.partialorder %v1629, 0.0004427343
  %v1631 = vsel %vm1630, %v1628, %v1625
  %v1632 = vadd.f32 %v1296, 1.0
  %v1633 = vlog2.pop %v1632
  %v1634 = vmul.f32 %v1633, 0.6931472
  %v1635 = vmul.f32 -0.5, %v1296
  %v1636 = vadd.f32 %v1635, 1.0
  %v1637 = vmul.f32 %v1636, %v1296
  %v1638 = vand.u32 2147483647, %v1296
  %vm1639 = vcmp.lt.f32.partialorder %v1638, 0.0004427343
  %v1640 = vsel %vm1639, %v1637, %v1634
  %v1641 = vadd.f32 %v1301, 1.0
  %v1642 = vlog2.pop %v1641
  %v1643 = vmul.f32 %v1642, 0.6931472
  %v1644 = vmul.f32 -0.5, %v1301
  %v1645 = vadd.f32 %v1644, 1.0
  %v1646 = vmul.f32 %v1645, %v1301
  %v1647 = vand.u32 2147483647, %v1301
  %vm1648 = vcmp.lt.f32.partialorder %v1647, 0.0004427343
  %v1649 = vsel %vm1648, %v1646, %v1643
  %v1650 = vadd.f32 %v1306, 1.0
  %v1651 = vlog2.pop %v1650
  %v1652 = vmul.f32 %v1651, 0.6931472
  %v1653 = vmul.f32 -0.5, %v1306
  %v1654 = vadd.f32 %v1653, 1.0
  %v1655 = vmul.f32 %v1654, %v1306
  %v1656 = vand.u32 2147483647, %v1306
  %vm1657 = vcmp.lt.f32.partialorder %v1656, 0.0004427343
  %v1658 = vsel %vm1657, %v1655, %v1652
  %v1659 = vadd.f32 %v1311, 1.0
  %v1660 = vlog2.pop %v1659
  %v1661 = vmul.f32 %v1660, 0.6931472
  %v1662 = vmul.f32 -0.5, %v1311
  %v1663 = vadd.f32 %v1662, 1.0
  %v1664 = vmul.f32 %v1663, %v1311
  %v1665 = vand.u32 2147483647, %v1311
  %vm1666 = vcmp.lt.f32.partialorder %v1665, 0.0004427343
  %v1667 = vsel %vm1666, %v1664, %v1661
  %v1668 = vadd.f32 %v1316, 1.0
  %v1669 = vlog2.pop %v1668
  %v1670 = vmul.f32 %v1669, 0.6931472
  %v1671 = vmul.f32 -0.5, %v1316
  %v1672 = vadd.f32 %v1671, 1.0
  %v1673 = vmul.f32 %v1672, %v1316
  %v1674 = vand.u32 2147483647, %v1316
  %vm1675 = vcmp.lt.f32.partialorder %v1674, 0.0004427343
  %v1676 = vsel %vm1675, %v1673, %v1670
  %v1677 = vadd.f32 %v1321, 1.0
  %v1678 = vlog2.pop %v1677
  %v1679 = vmul.f32 %v1678, 0.6931472
  %v1680 = vmul.f32 -0.5, %v1321
  %v1681 = vadd.f32 %v1680, 1.0
  %v1682 = vmul.f32 %v1681, %v1321
  %v1683 = vand.u32 2147483647, %v1321
  %vm1684 = vcmp.lt.f32.partialorder %v1683, 0.0004427343
  %v1685 = vsel %vm1684, %v1682, %v1679
  %v1686 = vadd.f32 %v1326, 1.0
  %v1687 = vlog2.pop %v1686
  %v1688 = vmul.f32 %v1687, 0.6931472
  %v1689 = vmul.f32 -0.5, %v1326
  %v1690 = vadd.f32 %v1689, 1.0
  %v1691 = vmul.f32 %v1690, %v1326
  %v1692 = vand.u32 2147483647, %v1326
  %vm1693 = vcmp.lt.f32.partialorder %v1692, 0.0004427343
  %v1694 = vsel %vm1693, %v1691, %v1688
  %v1695 = vadd.f32 %v1331, 1.0
  %v1696 = vlog2.pop %v1695
  %v1697 = vmul.f32 %v1696, 0.6931472
  %v1698 = vmul.f32 -0.5, %v1331
  %v1699 = vadd.f32 %v1698, 1.0
  %v1700 = vmul.f32 %v1699, %v1331
  %v1701 = vand.u32 2147483647, %v1331
  %vm1702 = vcmp.lt.f32.partialorder %v1701, 0.0004427343
  %v1703 = vsel %vm1702, %v1700, %v1697
  %v1704 = vadd.f32 %v1336, 1.0
  %v1705 = vlog2.pop %v1704
  %v1706 = vmul.f32 %v1705, 0.6931472
  %v1707 = vmul.f32 -0.5, %v1336
  %v1708 = vadd.f32 %v1707, 1.0
  %v1709 = vmul.f32 %v1708, %v1336
  %v1710 = vand.u32 2147483647, %v1336
  %vm1711 = vcmp.lt.f32.partialorder %v1710, 0.0004427343
  %v1712 = vsel %vm1711, %v1709, %v1706
  %v1713 = vadd.f32 %v1341, 1.0
  %v1714 = vlog2.pop %v1713
  %v1715 = vmul.f32 %v1714, 0.6931472
  %v1716 = vmul.f32 -0.5, %v1341
  %v1717 = vadd.f32 %v1716, 1.0
  %v1718 = vmul.f32 %v1717, %v1341
  %v1719 = vand.u32 2147483647, %v1341
  %vm1720 = vcmp.lt.f32.partialorder %v1719, 0.0004427343
  %v1721 = vsel %vm1720, %v1718, %v1715
  %v1722 = vadd.f32 %v1346, 1.0
  %v1723 = vlog2.pop %v1722
  %v1724 = vmul.f32 %v1723, 0.6931472
  %v1725 = vmul.f32 -0.5, %v1346
  %v1726 = vadd.f32 %v1725, 1.0
  %v1727 = vmul.f32 %v1726, %v1346
  %v1728 = vand.u32 2147483647, %v1346
  %vm1729 = vcmp.lt.f32.partialorder %v1728, 0.0004427343
  %v1730 = vsel %vm1729, %v1727, %v1724
  %v1731 = vadd.f32 %v1351, 1.0
  %v1732 = vlog2.pop %v1731
  %v1733 = vmul.f32 %v1732, 0.6931472
  %v1734 = vmul.f32 -0.5, %v1351
  %v1735 = vadd.f32 %v1734, 1.0
  %v1736 = vmul.f32 %v1735, %v1351
  %v1737 = vand.u32 2147483647, %v1351
  %vm1738 = vcmp.lt.f32.partialorder %v1737, 0.0004427343
  %v1739 = vsel %vm1738, %v1736, %v1733
  %v1740 = vadd.f32 %v1356, 1.0
  %v1741 = vlog2.pop %v1740
  %v1742 = vmul.f32 %v1741, 0.6931472
  %v1743 = vmul.f32 -0.5, %v1356
  %v1744 = vadd.f32 %v1743, 1.0
  %v1745 = vmul.f32 %v1744, %v1356
  %v1746 = vand.u32 2147483647, %v1356
  %vm1747 = vcmp.lt.f32.partialorder %v1746, 0.0004427343
  %v1748 = vsel %vm1747, %v1745, %v1742
  %v1749 = vadd.f32 %v1361, 1.0
  %v1750 = vlog2.pop %v1749
  %v1751 = vmul.f32 %v1750, 0.6931472
  %v1752 = vmul.f32 -0.5, %v1361
  %v1753 = vadd.f32 %v1752, 1.0
  %v1754 = vmul.f32 %v1753, %v1361
  %v1755 = vand.u32 2147483647, %v1361
  %vm1756 = vcmp.lt.f32.partialorder %v1755, 0.0004427343
  %v1757 = vsel %vm1756, %v1754, %v1751
  %v1758 = vadd.f32 %v1366, 1.0
  %v1759 = vlog2.pop %v1758
  %v1760 = vmul.f32 %v1759, 0.6931472
  %v1761 = vmul.f32 -0.5, %v1366
  %v1762 = vadd.f32 %v1761, 1.0
  %v1763 = vmul.f32 %v1762, %v1366
  %v1764 = vand.u32 2147483647, %v1366
  %vm1765 = vcmp.lt.f32.partialorder %v1764, 0.0004427343
  %v1766 = vsel %vm1765, %v1763, %v1760
  %v1767 = vadd.f32 %v1371, 1.0
  %v1768 = vlog2.pop %v1767
  %v1769 = vmul.f32 %v1768, 0.6931472
  %v1770 = vmul.f32 -0.5, %v1371
  %v1771 = vadd.f32 %v1770, 1.0
  %v1772 = vmul.f32 %v1771, %v1371
  %v1773 = vand.u32 2147483647, %v1371
  %vm1774 = vcmp.lt.f32.partialorder %v1773, 0.0004427343
  %v1775 = vsel %vm1774, %v1772, %v1769
  %v1776 = vadd.f32 %v1376, 1.0
  %v1777 = vlog2.pop %v1776
  %v1778 = vmul.f32 %v1777, 0.6931472
  %v1779 = vmul.f32 -0.5, %v1376
  %v1780 = vadd.f32 %v1779, 1.0
  %v1781 = vmul.f32 %v1780, %v1376
  %v1782 = vand.u32 2147483647, %v1376
  %vm1783 = vcmp.lt.f32.partialorder %v1782, 0.0004427343
  %v1784 = vsel %vm1783, %v1781, %v1778
  %v1785 = vadd.f32 %v1381, 1.0
  %v1786 = vlog2.pop %v1785
  %v1787 = vmul.f32 %v1786, 0.6931472
  %v1788 = vmul.f32 -0.5, %v1381
  %v1789 = vadd.f32 %v1788, 1.0
  %v1790 = vmul.f32 %v1789, %v1381
  %v1791 = vand.u32 2147483647, %v1381
  %vm1792 = vcmp.lt.f32.partialorder %v1791, 0.0004427343
  %v1793 = vsel %vm1792, %v1790, %v1787
  %v1794 = vadd.f32 %v1386, 1.0
  %v1795 = vlog2.pop %v1794
  %v1796 = vmul.f32 %v1795, 0.6931472
  %v1797 = vmul.f32 -0.5, %v1386
  %v1798 = vadd.f32 %v1797, 1.0
  %v1799 = vmul.f32 %v1798, %v1386
  %v1800 = vand.u32 2147483647, %v1386
  %vm1801 = vcmp.lt.f32.partialorder %v1800, 0.0004427343
  %v1802 = vsel %vm1801, %v1799, %v1796
  %v1803 = vadd.f32 %v1391, 1.0
  %v1804 = vlog2.pop %v1803
  %v1805 = vmul.f32 %v1804, 0.6931472
  %v1806 = vmul.f32 -0.5, %v1391
  %v1807 = vadd.f32 %v1806, 1.0
  %v1808 = vmul.f32 %v1807, %v1391
  %v1809 = vand.u32 2147483647, %v1391
  %vm1810 = vcmp.lt.f32.partialorder %v1809, 0.0004427343
  %v1811 = vsel %vm1810, %v1808, %v1805
  %v1812 = vadd.f32 %v1396, 1.0
  %v1813 = vlog2.pop %v1812
  %v1814 = vmul.f32 %v1813, 0.6931472
  %v1815 = vmul.f32 -0.5, %v1396
  %v1816 = vadd.f32 %v1815, 1.0
  %v1817 = vmul.f32 %v1816, %v1396
  %v1818 = vand.u32 2147483647, %v1396
  %vm1819 = vcmp.lt.f32.partialorder %v1818, 0.0004427343
  %v1820 = vsel %vm1819, %v1817, %v1814
  %v1821 = vadd.f32 %v1401, 1.0
  %v1822 = vlog2.pop %v1821
  %v1823 = vmul.f32 %v1822, 0.6931472
  %v1824 = vmul.f32 -0.5, %v1401
  %v1825 = vadd.f32 %v1824, 1.0
  %v1826 = vmul.f32 %v1825, %v1401
  %v1827 = vand.u32 2147483647, %v1401
  %vm1828 = vcmp.lt.f32.partialorder %v1827, 0.0004427343
  %v1829 = vsel %vm1828, %v1826, %v1823
  %v1830 = vadd.f32 %v1406, 1.0
  %v1831 = vlog2.pop %v1830
  %v1832 = vmul.f32 %v1831, 0.6931472
  %v1833 = vmul.f32 -0.5, %v1406
  %v1834 = vadd.f32 %v1833, 1.0
  %v1835 = vmul.f32 %v1834, %v1406
  %v1836 = vand.u32 2147483647, %v1406
  %vm1837 = vcmp.lt.f32.partialorder %v1836, 0.0004427343
  %v1838 = vsel %vm1837, %v1835, %v1832
  %v1839 = vadd.f32 %v1411, 1.0
  %v1840 = vlog2.pop %v1839
  %v1841 = vmul.f32 %v1840, 0.6931472
  %v1842 = vmul.f32 -0.5, %v1411
  %v1843 = vadd.f32 %v1842, 1.0
  %v1844 = vmul.f32 %v1843, %v1411
  %v1845 = vand.u32 2147483647, %v1411
  %vm1846 = vcmp.lt.f32.partialorder %v1845, 0.0004427343
  %v1847 = vsel %vm1846, %v1844, %v1841
  %v1848 = vadd.f32 %v1416, 1.0
  %v1849 = vlog2.pop %v1848
  %v1850 = vmul.f32 %v1849, 0.6931472
  %v1851 = vmul.f32 -0.5, %v1416
  %v1852 = vadd.f32 %v1851, 1.0
  %v1853 = vmul.f32 %v1852, %v1416
  %v1854 = vand.u32 2147483647, %v1416
  %vm1855 = vcmp.lt.f32.partialorder %v1854, 0.0004427343
  %v1856 = vsel %vm1855, %v1853, %v1850
  %v1857 = vadd.f32 %v1421, 1.0
  %v1858 = vlog2.pop %v1857
  %v1859 = vmul.f32 %v1858, 0.6931472
  %v1860 = vmul.f32 -0.5, %v1421
  %v1861 = vadd.f32 %v1860, 1.0
  %v1862 = vmul.f32 %v1861, %v1421
  %v1863 = vand.u32 2147483647, %v1421
  %vm1864 = vcmp.lt.f32.partialorder %v1863, 0.0004427343
  %v1865 = vsel %vm1864, %v1862, %v1859
  %v1866 = vadd.f32 %v1426, 1.0
  %v1867 = vlog2.pop %v1866
  %v1868 = vmul.f32 %v1867, 0.6931472
  %v1869 = vmul.f32 -0.5, %v1426
  %v1870 = vadd.f32 %v1869, 1.0
  %v1871 = vmul.f32 %v1870, %v1426
  %v1872 = vand.u32 2147483647, %v1426
  %vm1873 = vcmp.lt.f32.partialorder %v1872, 0.0004427343
  %v1874 = vsel %vm1873, %v1871, %v1868
  %v1875 = vadd.f32 %v1431, 1.0
  %v1876 = vlog2.pop %v1875
  %v1877 = vmul.f32 %v1876, 0.6931472
  %v1878 = vmul.f32 -0.5, %v1431
  %v1879 = vadd.f32 %v1878, 1.0
  %v1880 = vmul.f32 %v1879, %v1431
  %v1881 = vand.u32 2147483647, %v1431
  %vm1882 = vcmp.lt.f32.partialorder %v1881, 0.0004427343
  %v1883 = vsel %vm1882, %v1880, %v1877
  %v1884 = vadd.f32 %v1436, 1.0
  %v1885 = vlog2.pop %v1884
  %v1886 = vmul.f32 %v1885, 0.6931472
  %v1887 = vmul.f32 -0.5, %v1436
  %v1888 = vadd.f32 %v1887, 1.0
  %v1889 = vmul.f32 %v1888, %v1436
  %v1890 = vand.u32 2147483647, %v1436
  %vm1891 = vcmp.lt.f32.partialorder %v1890, 0.0004427343
  %v1892 = vsel %vm1891, %v1889, %v1886
  %v1893 = vadd.f32 %v1441, 1.0
  %v1894 = vlog2.pop %v1893
  %v1895 = vmul.f32 %v1894, 0.6931472
  %v1896 = vmul.f32 -0.5, %v1441
  %v1897 = vadd.f32 %v1896, 1.0
  %v1898 = vmul.f32 %v1897, %v1441
  %v1899 = vand.u32 2147483647, %v1441
  %vm1900 = vcmp.lt.f32.partialorder %v1899, 0.0004427343
  %v1901 = vsel %vm1900, %v1898, %v1895
  %v1902 = vadd.f32 %v1446, 1.0
  %v1903 = vlog2.pop %v1902
  %v1904 = vmul.f32 %v1903, 0.6931472
  %v1905 = vmul.f32 -0.5, %v1446
  %v1906 = vadd.f32 %v1905, 1.0
  %v1907 = vmul.f32 %v1906, %v1446
  %v1908 = vand.u32 2147483647, %v1446
  %vm1909 = vcmp.lt.f32.partialorder %v1908, 0.0004427343
  %v1910 = vsel %vm1909, %v1907, %v1904
  %v1911 = vadd.f32 %v1451, 1.0
  %v1912 = vlog2.pop %v1911
  %v1913 = vmul.f32 %v1912, 0.6931472
  %v1914 = vmul.f32 -0.5, %v1451
  %v1915 = vadd.f32 %v1914, 1.0
  %v1916 = vmul.f32 %v1915, %v1451
  %v1917 = vand.u32 2147483647, %v1451
  %vm1918 = vcmp.lt.f32.partialorder %v1917, 0.0004427343
  %v1919 = vsel %vm1918, %v1916, %v1913
  %v1920 = vadd.f32 %v1456, 1.0
  %v1921 = vlog2.pop %v1920
  %v1922 = vmul.f32 %v1921, 0.6931472
  %v1923 = vmul.f32 -0.5, %v1456
  %v1924 = vadd.f32 %v1923, 1.0
  %v1925 = vmul.f32 %v1924, %v1456
  %v1926 = vand.u32 2147483647, %v1456
  %vm1927 = vcmp.lt.f32.partialorder %v1926, 0.0004427343
  %v1928 = vsel %vm1927, %v1925, %v1922
  %v1929 = vadd.f32 %v1461, 1.0
  %v1930 = vlog2.pop %v1929
  %v1931 = vmul.f32 %v1930, 0.6931472
  %v1932 = vmul.f32 -0.5, %v1461
  %v1933 = vadd.f32 %v1932, 1.0
  %v1934 = vmul.f32 %v1933, %v1461
  %v1935 = vand.u32 2147483647, %v1461
  %vm1936 = vcmp.lt.f32.partialorder %v1935, 0.0004427343
  %v1937 = vsel %vm1936, %v1934, %v1931
  %v1938 = vadd.f32 %v1466, 1.0
  %v1939 = vlog2.pop %v1938
  %v1940 = vmul.f32 %v1939, 0.6931472
  %v1941 = vmul.f32 -0.5, %v1466
  %v1942 = vadd.f32 %v1941, 1.0
  %v1943 = vmul.f32 %v1942, %v1466
  %v1944 = vand.u32 2147483647, %v1466
  %vm1945 = vcmp.lt.f32.partialorder %v1944, 0.0004427343
  %v1946 = vsel %vm1945, %v1943, %v1940
  %v1947 = vadd.f32 %v1471, 1.0
  %v1948 = vlog2.pop %v1947
  %v1949 = vmul.f32 %v1948, 0.6931472
  %v1950 = vmul.f32 -0.5, %v1471
  %v1951 = vadd.f32 %v1950, 1.0
  %v1952 = vmul.f32 %v1951, %v1471
  %v1953 = vand.u32 2147483647, %v1471
  %vm1954 = vcmp.lt.f32.partialorder %v1953, 0.0004427343
  %v1955 = vsel %vm1954, %v1952, %v1949
  %v1956 = vadd.f32 %v1476, 1.0
  %v1957 = vlog2.pop %v1956
  %v1958 = vmul.f32 %v1957, 0.6931472
  %v1959 = vmul.f32 -0.5, %v1476
  %v1960 = vadd.f32 %v1959, 1.0
  %v1961 = vmul.f32 %v1960, %v1476
  %v1962 = vand.u32 2147483647, %v1476
  %vm1963 = vcmp.lt.f32.partialorder %v1962, 0.0004427343
  %v1964 = vsel %vm1963, %v1961, %v1958
  %v1965 = vadd.f32 %v1481, 1.0
  %v1966 = vlog2.pop %v1965
  %v1967 = vmul.f32 %v1966, 0.6931472
  %v1968 = vmul.f32 -0.5, %v1481
  %v1969 = vadd.f32 %v1968, 1.0
  %v1970 = vmul.f32 %v1969, %v1481
  %v1971 = vand.u32 2147483647, %v1481
  %vm1972 = vcmp.lt.f32.partialorder %v1971, 0.0004427343
  %v1973 = vsel %vm1972, %v1970, %v1967
  %v1974 = vadd.f32 %v1486, 1.0
  %v1975 = vlog2.pop %v1974
  %v1976 = vmul.f32 %v1975, 0.6931472
  %v1977 = vmul.f32 -0.5, %v1486
  %v1978 = vadd.f32 %v1977, 1.0
  %v1979 = vmul.f32 %v1978, %v1486
  %v1980 = vand.u32 2147483647, %v1486
  %vm1981 = vcmp.lt.f32.partialorder %v1980, 0.0004427343
  %v1982 = vsel %vm1981, %v1979, %v1976
  %v1983 = vadd.f32 %v1491, 1.0
  %v1984 = vlog2.pop %v1983
  %v1985 = vmul.f32 %v1984, 0.6931472
  %v1986 = vmul.f32 -0.5, %v1491
  %v1987 = vadd.f32 %v1986, 1.0
  %v1988 = vmul.f32 %v1987, %v1491
  %v1989 = vand.u32 2147483647, %v1491
  %vm1990 = vcmp.lt.f32.partialorder %v1989, 0.0004427343
  %v1991 = vsel %vm1990, %v1988, %v1985
  %v1992 = vadd.f32 %v1496, 1.0
  %v1993 = vlog2.pop %v1992
  %v1994 = vmul.f32 %v1993, 0.6931472
  %v1995 = vmul.f32 -0.5, %v1496
  %v1996 = vadd.f32 %v1995, 1.0
  %v1997 = vmul.f32 %v1996, %v1496
  %v1998 = vand.u32 2147483647, %v1496
  %vm1999 = vcmp.lt.f32.partialorder %v1998, 0.0004427343
  %v2000 = vsel %vm1999, %v1997, %v1994
  %v2001 = vadd.f32 %v1501, 1.0
  %v2002 = vlog2.pop %v2001
  %v2003 = vmul.f32 %v2002, 0.6931472
  %v2004 = vmul.f32 -0.5, %v1501
  %v2005 = vadd.f32 %v2004, 1.0
  %v2006 = vmul.f32 %v2005, %v1501
  %v2007 = vand.u32 2147483647, %v1501
  %vm2008 = vcmp.lt.f32.partialorder %v2007, 0.0004427343
  %v2009 = vsel %vm2008, %v2006, %v2003
  %v2010 = vadd.f32 %v1506, 1.0
  %v2011 = vlog2.pop %v2010
  %v2012 = vmul.f32 %v2011, 0.6931472
  %v2013 = vmul.f32 -0.5, %v1506
  %v2014 = vadd.f32 %v2013, 1.0
  %v2015 = vmul.f32 %v2014, %v1506
  %v2016 = vand.u32 2147483647, %v1506
  %vm2017 = vcmp.lt.f32.partialorder %v2016, 0.0004427343
  %v2018 = vsel %vm2017, %v2015, %v2012
  %v2019 = vadd.f32 %v1511, 1.0
  %v2020 = vlog2.pop %v2019
  %v2021 = vmul.f32 %v2020, 0.6931472
  %v2022 = vmul.f32 -0.5, %v1511
  %v2023 = vadd.f32 %v2022, 1.0
  %v2024 = vmul.f32 %v2023, %v1511
  %v2025 = vand.u32 2147483647, %v1511
  %vm2026 = vcmp.lt.f32.partialorder %v2025, 0.0004427343
  %v2027 = vsel %vm2026, %v2024, %v2021
  %v2028 = vadd.f32 %v1516, 1.0
  %v2029 = vlog2.pop %v2028
  %v2030 = vmul.f32 %v2029, 0.6931472
  %v2031 = vmul.f32 -0.5, %v1516
  %v2032 = vadd.f32 %v2031, 1.0
  %v2033 = vmul.f32 %v2032, %v1516
  %v2034 = vand.u32 2147483647, %v1516
  %vm2035 = vcmp.lt.f32.partialorder %v2034, 0.0004427343
  %v2036 = vsel %vm2035, %v2033, %v2030
  %v2037 = vadd.f32 %v1521, 1.0
  %v2038 = vlog2.pop %v2037
  %v2039 = vmul.f32 %v2038, 0.6931472
  %v2040 = vmul.f32 -0.5, %v1521
  %v2041 = vadd.f32 %v2040, 1.0
  %v2042 = vmul.f32 %v2041, %v1521
  %v2043 = vand.u32 2147483647, %v1521
  %vm2044 = vcmp.lt.f32.partialorder %v2043, 0.0004427343
  %v2045 = vsel %vm2044, %v2042, %v2039
  %v2046 = vadd.f32 %v1526, 1.0
  %v2047 = vlog2.pop %v2046
  %v2048 = vmul.f32 %v2047, 0.6931472
  %v2049 = vmul.f32 -0.5, %v1526
  %v2050 = vadd.f32 %v2049, 1.0
  %v2051 = vmul.f32 %v2050, %v1526
  %v2052 = vand.u32 2147483647, %v1526
  %vm2053 = vcmp.lt.f32.partialorder %v2052, 0.0004427343
  %v2054 = vsel %vm2053, %v2051, %v2048
  %v2055 = vadd.f32 %v1531, 1.0
  %v2056 = vlog2.pop %v2055
  %v2057 = vmul.f32 %v2056, 0.6931472
  %v2058 = vmul.f32 -0.5, %v1531
  %v2059 = vadd.f32 %v2058, 1.0
  %v2060 = vmul.f32 %v2059, %v1531
  %v2061 = vand.u32 2147483647, %v1531
  %vm2062 = vcmp.lt.f32.partialorder %v2061, 0.0004427343
  %v2063 = vsel %vm2062, %v2060, %v2057
  %v2064 = vadd.f32 %v1536, 1.0
  %v2065 = vlog2.pop %v2064
  %v2066 = vmul.f32 %v2065, 0.6931472
  %v2067 = vmul.f32 -0.5, %v1536
  %v2068 = vadd.f32 %v2067, 1.0
  %v2069 = vmul.f32 %v2068, %v1536
  %v2070 = vand.u32 2147483647, %v1536
  %vm2071 = vcmp.lt.f32.partialorder %v2070, 0.0004427343
  %v2072 = vsel %vm2071, %v2069, %v2066
  %v2073 = vadd.f32 %v1541, 1.0
  %v2074 = vlog2.pop %v2073
  %v2075 = vmul.f32 %v2074, 0.6931472
  %v2076 = vmul.f32 -0.5, %v1541
  %v2077 = vadd.f32 %v2076, 1.0
  %v2078 = vmul.f32 %v2077, %v1541
  %v2079 = vand.u32 2147483647, %v1541
  %vm2080 = vcmp.lt.f32.partialorder %v2079, 0.0004427343
  %v2081 = vsel %vm2080, %v2078, %v2075
  %v2082 = vadd.f32 %v1546, 1.0
  %v2083 = vlog2.pop %v2082
  %v2084 = vmul.f32 %v2083, 0.6931472
  %v2085 = vmul.f32 -0.5, %v1546
  %v2086 = vadd.f32 %v2085, 1.0
  %v2087 = vmul.f32 %v2086, %v1546
  %v2088 = vand.u32 2147483647, %v1546
  %vm2089 = vcmp.lt.f32.partialorder %v2088, 0.0004427343
  %v2090 = vsel %vm2089, %v2087, %v2084
  %v2091 = vadd.f32 %v1551, 1.0
  %v2092 = vlog2.pop %v2091
  %v2093 = vmul.f32 %v2092, 0.6931472
  %v2094 = vmul.f32 -0.5, %v1551
  %v2095 = vadd.f32 %v2094, 1.0
  %v2096 = vmul.f32 %v2095, %v1551
  %v2097 = vand.u32 2147483647, %v1551
  %vm2098 = vcmp.lt.f32.partialorder %v2097, 0.0004427343
  %v2099 = vsel %vm2098, %v2096, %v2093
  %v2100 = vadd.f32 %v1556, 1.0
  %v2101 = vlog2.pop %v2100
  %v2102 = vmul.f32 %v2101, 0.6931472
  %v2103 = vmul.f32 -0.5, %v1556
  %v2104 = vadd.f32 %v2103, 1.0
  %v2105 = vmul.f32 %v2104, %v1556
  %v2106 = vand.u32 2147483647, %v1556
  %vm2107 = vcmp.lt.f32.partialorder %v2106, 0.0004427343
  %v2108 = vsel %vm2107, %v2105, %v2102
  %v2109 = vadd.f32 %v1561, 1.0
  %v2110 = vlog2.pop %v2109
  %v2111 = vmul.f32 %v2110, 0.6931472
  %v2112 = vmul.f32 -0.5, %v1561
  %v2113 = vadd.f32 %v2112, 1.0
  %v2114 = vmul.f32 %v2113, %v1561
  %v2115 = vand.u32 2147483647, %v1561
  %vm2116 = vcmp.lt.f32.partialorder %v2115, 0.0004427343
  %v2117 = vsel %vm2116, %v2114, %v2111
  %v2118 = vadd.f32 %v1566, 1.0
  %v2119 = vlog2.pop %v2118
  %v2120 = vmul.f32 %v2119, 0.6931472
  %v2121 = vmul.f32 -0.5, %v1566
  %v2122 = vadd.f32 %v2121, 1.0
  %v2123 = vmul.f32 %v2122, %v1566
  %v2124 = vand.u32 2147483647, %v1566
  %vm2125 = vcmp.lt.f32.partialorder %v2124, 0.0004427343
  %v2126 = vsel %vm2125, %v2123, %v2120
  %v2127 = vadd.f32 %v1571, 1.0
  %v2128 = vlog2.pop %v2127
  %v2129 = vmul.f32 %v2128, 0.6931472
  %v2130 = vmul.f32 -0.5, %v1571
  %v2131 = vadd.f32 %v2130, 1.0
  %v2132 = vmul.f32 %v2131, %v1571
  %v2133 = vand.u32 2147483647, %v1571
  %vm2134 = vcmp.lt.f32.partialorder %v2133, 0.0004427343
  %v2135 = vsel %vm2134, %v2132, %v2129
  %v2136 = vadd.f32 %v1576, 1.0
  %v2137 = vlog2.pop %v2136
  %v2138 = vmul.f32 %v2137, 0.6931472
  %v2139 = vmul.f32 -0.5, %v1576
  %v2140 = vadd.f32 %v2139, 1.0
  %v2141 = vmul.f32 %v2140, %v1576
  %v2142 = vand.u32 2147483647, %v1576
  %vm2143 = vcmp.lt.f32.partialorder %v2142, 0.0004427343
  %v2144 = vsel %vm2143, %v2141, %v2138
  %v2145 = vadd.f32 %v1581, 1.0
  %v2146 = vlog2.pop %v2145
  %v2147 = vmul.f32 %v2146, 0.6931472
  %v2148 = vmul.f32 -0.5, %v1581
  %v2149 = vadd.f32 %v2148, 1.0
  %v2150 = vmul.f32 %v2149, %v1581
  %v2151 = vand.u32 2147483647, %v1581
  %vm2152 = vcmp.lt.f32.partialorder %v2151, 0.0004427343
  %v2153 = vsel %vm2152, %v2150, %v2147
  %v2154 = vadd.f32 %v1586, 1.0
  %v2155 = vlog2.pop %v2154
  %v2156 = vmul.f32 %v2155, 0.6931472
  %v2157 = vmul.f32 -0.5, %v1586
  %v2158 = vadd.f32 %v2157, 1.0
  %v2159 = vmul.f32 %v2158, %v1586
  %v2160 = vand.u32 2147483647, %v1586
  %vm2161 = vcmp.lt.f32.partialorder %v2160, 0.0004427343
  %v2162 = vsel %vm2161, %v2159, %v2156
  %v2163 = vadd.f32 %v1591, 1.0
  %v2164 = vlog2.pop %v2163
  %v2165 = vmul.f32 %v2164, 0.6931472
  %v2166 = vmul.f32 -0.5, %v1591
  %v2167 = vadd.f32 %v2166, 1.0
  %v2168 = vmul.f32 %v2167, %v1591
  %v2169 = vand.u32 2147483647, %v1591
  %vm2170 = vcmp.lt.f32.partialorder %v2169, 0.0004427343
  %v2171 = vsel %vm2170, %v2168, %v2165
  %v2172 = vadd.f32 %v1596, 1.0
  %v2173 = vlog2.pop %v2172
  %v2174 = vmul.f32 %v2173, 0.6931472
  %v2175 = vmul.f32 -0.5, %v1596
  %v2176 = vadd.f32 %v2175, 1.0
  %v2177 = vmul.f32 %v2176, %v1596
  %v2178 = vand.u32 2147483647, %v1596
  %vm2179 = vcmp.lt.f32.partialorder %v2178, 0.0004427343
  %v2180 = vsel %vm2179, %v2177, %v2174
  %v2181 = vadd.f32 %v1601, 1.0
  %v2182 = vlog2.pop %v2181
  %v2183 = vmul.f32 %v2182, 0.6931472
  %v2184 = vmul.f32 -0.5, %v1601
  %v2185 = vadd.f32 %v2184, 1.0
  %v2186 = vmul.f32 %v2185, %v1601
  %v2187 = vand.u32 2147483647, %v1601
  %vm2188 = vcmp.lt.f32.partialorder %v2187, 0.0004427343
  %v2189 = vsel %vm2188, %v2186, %v2183
  %v2190 = vadd.f32 %v1606, 1.0
  %v2191 = vlog2.pop %v2190
  %v2192 = vmul.f32 %v2191, 0.6931472
  %v2193 = vmul.f32 -0.5, %v1606
  %v2194 = vadd.f32 %v2193, 1.0
  %v2195 = vmul.f32 %v2194, %v1606
  %v2196 = vand.u32 2147483647, %v1606
  %vm2197 = vcmp.lt.f32.partialorder %v2196, 0.0004427343
  %v2198 = vsel %vm2197, %v2195, %v2192
  %v2199 = vadd.f32 %v1611, 1.0
  %v2200 = vlog2.pop %v2199
  %v2201 = vmul.f32 %v2200, 0.6931472
  %v2202 = vmul.f32 -0.5, %v1611
  %v2203 = vadd.f32 %v2202, 1.0
  %v2204 = vmul.f32 %v2203, %v1611
  %v2205 = vand.u32 2147483647, %v1611
  %vm2206 = vcmp.lt.f32.partialorder %v2205, 0.0004427343
  %v2207 = vsel %vm2206, %v2204, %v2201
  %v2208 = vld [vmem:[%s4] sm:$0xff]
  %v2209 = vld [vmem:[%s4 + $0x8] sm:$0xff]
  %v2210 = vld [vmem:[%s4 + $0x10] sm:$0xff]
  %v2211 = vld [vmem:[%s4 + $0x18] sm:$0xff]
  %v2212 = vld [vmem:[%s4 + $0x20] sm:$0xff]
  %v2213 = vld [vmem:[%s4 + $0x28] sm:$0xff]
  %v2214 = vld [vmem:[%s4 + $0x30] sm:$0xff]
  %v2215 = vld [vmem:[%s4 + $0x38] sm:$0xff]
  %v2216 = vld [vmem:[%s4 + $0x40] sm:$0xff]
  %v2217 = vld [vmem:[%s4 + $0x48] sm:$0xff]
  %v2218 = vld [vmem:[%s4 + $0x50] sm:$0xff]
  %v2219 = vld [vmem:[%s4 + $0x58] sm:$0xff]
  %v2220 = vld [vmem:[%s4 + $0x60] sm:$0xff]
  %v2221 = vld [vmem:[%s4 + $0x68] sm:$0xff]
  %v2222 = vld [vmem:[%s4 + $0x70] sm:$0xff]
  %v2223 = vld [vmem:[%s4 + $0x78] sm:$0xff]
  %v2224 = vld [vmem:[%s4 + $0x80] sm:$0xff]
  %v2225 = vld [vmem:[%s4 + $0x88] sm:$0xff]
  %v2226 = vld [vmem:[%s4 + $0x90] sm:$0xff]
  %v2227 = vld [vmem:[%s4 + $0x98] sm:$0xff]
  %v2228 = vld [vmem:[%s4 + $0xa0] sm:$0xff]
  %v2229 = vld [vmem:[%s4 + $0xa8] sm:$0xff]
  %v2230 = vld [vmem:[%s4 + $0xb0] sm:$0xff]
  %v2231 = vld [vmem:[%s4 + $0xb8] sm:$0xff]
  %v2232 = vld [vmem:[%s4 + $0xc0] sm:$0xff]
  %v2233 = vld [vmem:[%s4 + $0xc8] sm:$0xff]
  %v2234 = vld [vmem:[%s4 + $0xd0] sm:$0xff]
  %v2235 = vld [vmem:[%s4 + $0xd8] sm:$0xff]
  %v2236 = vld [vmem:[%s4 + $0xe0] sm:$0xff]
  %v2237 = vld [vmem:[%s4 + $0xe8] sm:$0xff]
  %v2238 = vld [vmem:[%s4 + $0xf0] sm:$0xff]
  %v2239 = vld [vmem:[%s4 + $0xf8] sm:$0xff]
  %v2240 = vld [vmem:[%s4 + $0x100] sm:$0xff]
  %v2241 = vld [vmem:[%s4 + $0x108] sm:$0xff]
  %v2242 = vld [vmem:[%s4 + $0x110] sm:$0xff]
  %v2243 = vld [vmem:[%s4 + $0x118] sm:$0xff]
  %v2244 = vld [vmem:[%s4 + $0x120] sm:$0xff]
  %v2245 = vld [vmem:[%s4 + $0x128] sm:$0xff]
  %v2246 = vld [vmem:[%s4 + $0x130] sm:$0xff]
  %v2247 = vld [vmem:[%s4 + $0x138] sm:$0xff]
  %v2248 = vld [vmem:[%s4 + $0x140] sm:$0xff]
  %v2249 = vld [vmem:[%s4 + $0x148] sm:$0xff]
  %v2250 = vld [vmem:[%s4 + $0x150] sm:$0xff]
  %v2251 = vld [vmem:[%s4 + $0x158] sm:$0xff]
  %v2252 = vld [vmem:[%s4 + $0x160] sm:$0xff]
  %v2253 = vld [vmem:[%s4 + $0x168] sm:$0xff]
  %v2254 = vld [vmem:[%s4 + $0x170] sm:$0xff]
  %v2255 = vld [vmem:[%s4 + $0x178] sm:$0xff]
  %v2256 = vld [vmem:[%s4 + $0x180] sm:$0xff]
  %v2257 = vld [vmem:[%s4 + $0x188] sm:$0xff]
  %v2258 = vld [vmem:[%s4 + $0x190] sm:$0xff]
  %v2259 = vld [vmem:[%s4 + $0x198] sm:$0xff]
  %v2260 = vld [vmem:[%s4 + $0x1a0] sm:$0xff]
  %v2261 = vld [vmem:[%s4 + $0x1a8] sm:$0xff]
  %v2262 = vld [vmem:[%s4 + $0x1b0] sm:$0xff]
  %v2263 = vld [vmem:[%s4 + $0x1b8] sm:$0xff]
  %v2264 = vld [vmem:[%s4 + $0x1c0] sm:$0xff]
  %v2265 = vld [vmem:[%s4 + $0x1c8] sm:$0xff]
  %v2266 = vld [vmem:[%s4 + $0x1d0] sm:$0xff]
  %v2267 = vld [vmem:[%s4 + $0x1d8] sm:$0xff]
  %v2268 = vld [vmem:[%s4 + $0x1e0] sm:$0xff]
  %v2269 = vld [vmem:[%s4 + $0x1e8] sm:$0xff]
  %v2270 = vld [vmem:[%s4 + $0x1f0] sm:$0xff]
  %v2271 = vld [vmem:[%s4 + $0x1f8] sm:$0xff]
  %v2272 = vld [vmem:[%s4 + $0x200] sm:$0xff]
  %v2273 = vld [vmem:[%s4 + $0x208] sm:$0xff]
  %v2274 = vmul.f32 %v1622, %v2208
  %v2275 = vmul.f32 %v1631, %v2209
  %v2276 = vmul.f32 %v1640, %v2210
  %v2277 = vmul.f32 %v1649, %v2211
  %v2278 = vmul.f32 %v1658, %v2212
  %v2279 = vmul.f32 %v1667, %v2213
  %v2280 = vmul.f32 %v1676, %v2214
  %v2281 = vmul.f32 %v1685, %v2215
  %v2282 = vmul.f32 %v1694, %v2216
  %v2283 = vmul.f32 %v1703, %v2217
  %v2284 = vmul.f32 %v1712, %v2218
  %v2285 = vmul.f32 %v1721, %v2219
  %v2286 = vmul.f32 %v1730, %v2220
  %v2287 = vmul.f32 %v1739, %v2221
  %v2288 = vmul.f32 %v1748, %v2222
  %v2289 = vmul.f32 %v1757, %v2223
  %v2290 = vmul.f32 %v1766, %v2224
  %v2291 = vmul.f32 %v1775, %v2225
  %v2292 = vmul.f32 %v1784, %v2226
  %v2293 = vmul.f32 %v1793, %v2227
  %v2294 = vmul.f32 %v1802, %v2228
  %v2295 = vmul.f32 %v1811, %v2229
  %v2296 = vmul.f32 %v1820, %v2230
  %v2297 = vmul.f32 %v1829, %v2231
  %v2298 = vmul.f32 %v1838, %v2232
  %v2299 = vmul.f32 %v1847, %v2233
  %v2300 = vmul.f32 %v1856, %v2234
  %v2301 = vmul.f32 %v1865, %v2235
  %v2302 = vmul.f32 %v1874, %v2236
  %v2303 = vmul.f32 %v1883, %v2237
  %v2304 = vmul.f32 %v1892, %v2238
  %v2305 = vmul.f32 %v1901, %v2239
  %v2306 = vmul.f32 %v1910, %v2240
  %v2307 = vmul.f32 %v1919, %v2241
  %v2308 = vmul.f32 %v1928, %v2242
  %v2309 = vmul.f32 %v1937, %v2243
  %v2310 = vmul.f32 %v1946, %v2244
  %v2311 = vmul.f32 %v1955, %v2245
  %v2312 = vmul.f32 %v1964, %v2246
  %v2313 = vmul.f32 %v1973, %v2247
  %v2314 = vmul.f32 %v1982, %v2248
  %v2315 = vmul.f32 %v1991, %v2249
  %v2316 = vmul.f32 %v2000, %v2250
  %v2317 = vmul.f32 %v2009, %v2251
  %v2318 = vmul.f32 %v2018, %v2252
  %v2319 = vmul.f32 %v2027, %v2253
  %v2320 = vmul.f32 %v2036, %v2254
  %v2321 = vmul.f32 %v2045, %v2255
  %v2322 = vmul.f32 %v2054, %v2256
  %v2323 = vmul.f32 %v2063, %v2257
  %v2324 = vmul.f32 %v2072, %v2258
  %v2325 = vmul.f32 %v2081, %v2259
  %v2326 = vmul.f32 %v2090, %v2260
  %v2327 = vmul.f32 %v2099, %v2261
  %v2328 = vmul.f32 %v2108, %v2262
  %v2329 = vmul.f32 %v2117, %v2263
  %v2330 = vmul.f32 %v2126, %v2264
  %v2331 = vmul.f32 %v2135, %v2265
  %v2332 = vmul.f32 %v2144, %v2266
  %v2333 = vmul.f32 %v2153, %v2267
  %v2334 = vmul.f32 %v2162, %v2268
  %v2335 = vmul.f32 %v2171, %v2269
  %v2336 = vmul.f32 %v2180, %v2270
  %v2337 = vmul.f32 %v2189, %v2271
  %v2338 = vmul.f32 %v2198, %v2272
  %v2339 = vmul.f32 %v2207, %v2273
  %vm2340 = vcmask 48128
  %v2341 = vsel %vm2340, %v2274, 0.0
  %v2342 = vsel %vm2340, %v2275, 0.0
  %v2343 = vadd.f32 %v2341, %v2342
  %v2344 = vsel %vm2340, %v2276, 0.0
  %v2345 = vadd.f32 %v2343, %v2344
  %v2346 = vsel %vm2340, %v2277, 0.0
  %v2347 = vadd.f32 %v2345, %v2346
  %v2348 = vsel %vm2340, %v2278, 0.0
  %v2349 = vadd.f32 %v2347, %v2348
  %v2350 = vsel %vm2340, %v2279, 0.0
  %v2351 = vadd.f32 %v2349, %v2350
  %v2352 = vsel %vm2340, %v2280, 0.0
  %v2353 = vadd.f32 %v2351, %v2352
  %v2354 = vsel %vm2340, %v2281, 0.0
  %v2355 = vadd.f32 %v2353, %v2354
  %v2356 = vsel %vm2340, %v2282, 0.0
  %v2357 = vadd.f32 %v2355, %v2356
  %v2358 = vsel %vm2340, %v2283, 0.0
  %v2359 = vadd.f32 %v2357, %v2358
  %v2360 = vsel %vm2340, %v2284, 0.0
  %v2361 = vadd.f32 %v2359, %v2360
  %v2362 = vsel %vm2340, %v2285, 0.0
  %v2363 = vadd.f32 %v2361, %v2362
  %v2364 = vsel %vm2340, %v2286, 0.0
  %v2365 = vadd.f32 %v2363, %v2364
  %v2366 = vsel %vm2340, %v2287, 0.0
  %v2367 = vadd.f32 %v2365, %v2366
  %v2368 = vsel %vm2340, %v2288, 0.0
  %v2369 = vadd.f32 %v2367, %v2368
  %v2370 = vsel %vm2340, %v2289, 0.0
  %v2371 = vadd.f32 %v2369, %v2370
  %v2372 = vsel %vm2340, %v2290, 0.0
  %v2373 = vadd.f32 %v2371, %v2372
  %v2374 = vsel %vm2340, %v2291, 0.0
  %v2375 = vadd.f32 %v2373, %v2374
  %v2376 = vsel %vm2340, %v2292, 0.0
  %v2377 = vadd.f32 %v2375, %v2376
  %v2378 = vsel %vm2340, %v2293, 0.0
  %v2379 = vadd.f32 %v2377, %v2378
  %v2380 = vsel %vm2340, %v2294, 0.0
  %v2381 = vadd.f32 %v2379, %v2380
  %v2382 = vsel %vm2340, %v2295, 0.0
  %v2383 = vadd.f32 %v2381, %v2382
  %v2384 = vsel %vm2340, %v2296, 0.0
  %v2385 = vadd.f32 %v2383, %v2384
  %v2386 = vsel %vm2340, %v2297, 0.0
  %v2387 = vadd.f32 %v2385, %v2386
  %v2388 = vsel %vm2340, %v2298, 0.0
  %v2389 = vadd.f32 %v2387, %v2388
  %v2390 = vsel %vm2340, %v2299, 0.0
  %v2391 = vadd.f32 %v2389, %v2390
  %v2392 = vsel %vm2340, %v2300, 0.0
  %v2393 = vadd.f32 %v2391, %v2392
  %v2394 = vsel %vm2340, %v2301, 0.0
  %v2395 = vadd.f32 %v2393, %v2394
  %v2396 = vsel %vm2340, %v2302, 0.0
  %v2397 = vadd.f32 %v2395, %v2396
  %v2398 = vsel %vm2340, %v2303, 0.0
  %v2399 = vadd.f32 %v2397, %v2398
  %v2400 = vsel %vm2340, %v2304, 0.0
  %v2401 = vadd.f32 %v2399, %v2400
  %v2402 = vsel %vm2340, %v2305, 0.0
  %v2403 = vadd.f32 %v2401, %v2402
  %v2404 = vsel %vm2340, %v2306, 0.0
  %v2405 = vadd.f32 %v2403, %v2404
  %v2406 = vsel %vm2340, %v2307, 0.0
  %v2407 = vadd.f32 %v2405, %v2406
  %v2408 = vsel %vm2340, %v2308, 0.0
  %v2409 = vadd.f32 %v2407, %v2408
  %v2410 = vsel %vm2340, %v2309, 0.0
  %v2411 = vadd.f32 %v2409, %v2410
  %v2412 = vsel %vm2340, %v2310, 0.0
  %v2413 = vadd.f32 %v2411, %v2412
  %v2414 = vsel %vm2340, %v2311, 0.0
  %v2415 = vadd.f32 %v2413, %v2414
  %v2416 = vsel %vm2340, %v2312, 0.0
  %v2417 = vadd.f32 %v2415, %v2416
  %v2418 = vsel %vm2340, %v2313, 0.0
  %v2419 = vadd.f32 %v2417, %v2418
  %v2420 = vsel %vm2340, %v2314, 0.0
  %v2421 = vadd.f32 %v2419, %v2420
  %v2422 = vsel %vm2340, %v2315, 0.0
  %v2423 = vadd.f32 %v2421, %v2422
  %v2424 = vsel %vm2340, %v2316, 0.0
  %v2425 = vadd.f32 %v2423, %v2424
  %v2426 = vsel %vm2340, %v2317, 0.0
  %v2427 = vadd.f32 %v2425, %v2426
  %v2428 = vsel %vm2340, %v2318, 0.0
  %v2429 = vadd.f32 %v2427, %v2428
  %v2430 = vsel %vm2340, %v2319, 0.0
  %v2431 = vadd.f32 %v2429, %v2430
  %v2432 = vsel %vm2340, %v2320, 0.0
  %v2433 = vadd.f32 %v2431, %v2432
  %v2434 = vsel %vm2340, %v2321, 0.0
  %v2435 = vadd.f32 %v2433, %v2434
  %v2436 = vsel %vm2340, %v2322, 0.0
  %v2437 = vadd.f32 %v2435, %v2436
  %v2438 = vsel %vm2340, %v2323, 0.0
  %v2439 = vadd.f32 %v2437, %v2438
  %v2440 = vsel %vm2340, %v2324, 0.0
  %v2441 = vadd.f32 %v2439, %v2440
  %v2442 = vsel %vm2340, %v2325, 0.0
  %v2443 = vadd.f32 %v2441, %v2442
  %v2444 = vsel %vm2340, %v2326, 0.0
  %v2445 = vadd.f32 %v2443, %v2444
  %v2446 = vsel %vm2340, %v2327, 0.0
  %v2447 = vadd.f32 %v2445, %v2446
  %v2448 = vsel %vm2340, %v2328, 0.0
  %v2449 = vadd.f32 %v2447, %v2448
  %v2450 = vsel %vm2340, %v2329, 0.0
  %v2451 = vadd.f32 %v2449, %v2450
  %v2452 = vsel %vm2340, %v2330, 0.0
  %v2453 = vadd.f32 %v2451, %v2452
  %v2454 = vsel %vm2340, %v2331, 0.0
  %v2455 = vadd.f32 %v2453, %v2454
  %v2456 = vsel %vm2340, %v2332, 0.0
  %v2457 = vadd.f32 %v2455, %v2456
  %v2458 = vsel %vm2340, %v2333, 0.0
  %v2459 = vadd.f32 %v2457, %v2458
  %v2460 = vsel %vm2340, %v2334, 0.0
  %v2461 = vadd.f32 %v2459, %v2460
  %v2462 = vsel %vm2340, %v2335, 0.0
  %v2463 = vadd.f32 %v2461, %v2462
  %v2464 = vsel %vm2340, %v2336, 0.0
  %v2465 = vadd.f32 %v2463, %v2464
  %v2466 = vsel %vm2340, %v2337, 0.0
  %v2467 = vadd.f32 %v2465, %v2466
  %v2468 = vsel %vm2340, %v2338, 0.0
  %v2469 = vadd.f32 %v2467, %v2468
  %v2470 = vsel %vm2340, %v2339, 0.0
  %v2471 = vadd.f32 %v2469, %v2470
  %v2472 = vrot.slane %v2471, 4
  %v2473 = vadd.f32 %v2471, %v2472
  %v2474 = vrot.slane %v2473, 2
  %v2475 = vadd.f32 %v2473, %v2474
  %v2476 = vrot.slane %v2475, 1
  %v2477 = vadd.f32 %v2475, %v2476
  %vm2478 = vcmask 40960
  %2479 = vst.msk [vmem:[%s5] sm:$0x1] %vm2478, %v2477
  // Predicated region
  $region22: #{conv_knrm_forward.1} parent=0 // pred_check
    _
  $region23: #{conv_knrm_forward.1} parent=0 // pred_check_branch
    %2481 = sbr.rel (0) target = $region25
  $region24: #{conv_knrm_forward.1} parent=0 // pred_region
    _
  $region25: #{conv_knrm_forward.1} parent=0 // pred_fallthru
    _
  // Predicated region
  $region26: #{conv_knrm_forward.1} parent=0 // pred_check
    _
  $region27: #{conv_knrm_forward.1} parent=0 // pred_check_branch
    %2483 = sbr.rel (0) target = $region29
  $region28: #{conv_knrm_forward.1} parent=0 // pred_region
    _
  $region29: #{conv_knrm_forward.1} parent=0 // pred_fallthru
    _

</llo_original>
